<compile_context>
chip_gen: v5e
topology: v5e:2x2
jax: 0.10.0
libtpu: 0.0.40
codegen_flags: <defaults>
</compile_context>

<pallas_src>
import numpy as np
import jax
import jax.numpy as jnp
from jax.experimental import pallas as pl
from jax.experimental.pallas import tpu as pltpu


_VMEM_LIMIT = 48 * 1024 * 1024   # > 16-32 MiB scoped defaults, < v7x 64 MiB/TC


# ---------------------------------------------------------------------------
# Phase decomposition helpers
# ---------------------------------------------------------------------------

def _phase_taps(v, s, p):
    """Taps (kernel index, compact-input offset) for output phase v.

    For a 1-D ConvTranspose with kernel 2s, stride s, padding p = s/2, output
    element o = u*s + v receives exactly two taps:
        w[k] * x[u + d]   for (k, d) in _phase_taps(v, s, p)
    (out-of-range x reads are zero).
    """
    if v + p < s:
        return ((v + p, 0), (v + p + s, -1))
    return ((v + p - s, 1), (v + p, 0))


def _interleave_phases(p, s, h, w):
    """(N, s*s, h, w) phase-blocked -> (N, h*s, w*s) spatially interleaved.

    Wrapper-side transpose/reshape: XLA executes it at HBM bandwidth, so no
    in-kernel relayout (MXU permutation matmuls / strided scatters) is needed.
    """
    n = p.shape[0]
    p5 = p.reshape(n, s, s, h, w)          # (n, vy, vx, uy, ux)
    return jnp.transpose(p5, (0, 3, 1, 4, 2)).reshape(n, h * s, w * s)


# ---------------------------------------------------------------------------
# Kernel 1: per-branch ConvTranspose2d upsample, phase-blocked output
# ---------------------------------------------------------------------------

def _build_upsample_kernel(strides, pads, shapes):
    n_side = len(strides)

    def kernel(*refs):
        xp_refs = refs[0:n_side]                       # padded compact maps
        w_refs = refs[n_side:2 * n_side]               # flat (K*K,) SMEM
        b_refs = refs[2 * n_side:3 * n_side]           # (1,) SMEM
        out_refs = refs[3 * n_side:4 * n_side]         # (s*s, h, w) VMEM

        for i in range(n_side):
            s, p = strides[i], pads[i]
            K = 2 * s
            h, w = shapes[i]
            xp_ref = xp_refs[i]
            bias = b_refs[i][0]
            # <= 9 shifted windows of the (wrapper-)zero-padded compact map,
            # each sliced once and reused across all s*s phases.
            wnd = {}
            for vy in range(s):
                ty = _phase_taps(vy, s, p)
                for vx in range(s):
                    tx = _phase_taps(vx, s, p)
                    acc = None
                    for ky, dy in ty:
                        for kx, dx in tx:
                            if (dy, dx) not in wnd:
                                wnd[(dy, dx)] = xp_ref[1 + dy:1 + dy + h,
                                                       1 + dx:1 + dx + w]
                            term = w_refs[i][ky * K + kx] * wnd[(dy, dx)]
                            acc = term if acc is None else acc + term
                    # Full contiguous (h, w) slab store behind a leading phase
                    # index -- no lane-offset sub-tile stores.
                    out_refs[i][vy * s + vx] = acc + bias

    return kernel


# ---------------------------------------------------------------------------
# Kernel 2: 1x1 fusion conv + (optional) final deconv, phase-blocked output
# ---------------------------------------------------------------------------

def _build_fuse_deconv_kernel(n_side, k, scale, H, W):
    def kernel(*refs):
        idx = 0
        x0_ref = refs[idx]; idx += 1
        u_refs = refs[idx:idx + n_side]; idx += n_side
        cw_ref = refs[idx]; idx += 1                   # (C,) SMEM
        cb_ref = refs[idx]; idx += 1                   # (1,) SMEM
        if scale:
            dw_ref = refs[idx]; idx += 1               # (4k^2,) SMEM
            db_ref = refs[idx]; idx += 1               # (1,) SMEM
        o_ref = refs[idx]; idx += 1
        if scale:
            fpad_ref = refs[idx]; idx += 1             # VMEM scratch

        # 1x1 fusion conv == weighted channel sum, accumulated in registers
        # (no stack, no HBM intermediates).
        fused = cb_ref[0] + cw_ref[0] * x0_ref[...]
        for i in range(n_side):
            fused = fused + cw_ref[i + 1] * u_refs[i][...]

        if not scale:
            o_ref[...] = fused
            return

        K = 2 * k
        p = k // 2
        # Stage the fused map once into a tile-rounded, zero-ringed VMEM
        # scratch; the zero fill is a single aligned full-buffer store and
        # only this one map per grid step goes through VMEM staging.
        fpad_ref[...] = jnp.zeros(fpad_ref.shape, jnp.float32)
        fpad_ref[1:H + 1, 1:W + 1] = fused
        wnd = {}
        for a in range(k):
            ta = _phase_taps(a, k, p)
            for b in range(k):
                tb = _phase_taps(b, k, p)
                acc = None
                for ky, dy in ta:
                    for kx, dx in tb:
                        if (dy, dx) not in wnd:
                            wnd[(dy, dx)] = fpad_ref[1 + dy:1 + dy + H,
                                                     1 + dx:1 + dx + W]
                        term = dw_ref[ky * K + kx] * wnd[(dy, dx)]
                        acc = term if acc is None else acc + term
                o_ref[a * k + b] = acc + db_ref[0]

    return kernel


# ---------------------------------------------------------------------------
# ConcatLayer port
# ---------------------------------------------------------------------------

class ConcatLayerPallas:
    """JAX/Pallas port of dssnet.ConcatLayer (deterministic synthetic init)."""

    def __init__(self, list_k, k, scale=True, key=jax.random.PRNGKey(0)):
        self.list_k = [int(K) for K in list_k]
        self.k = int(k)
        self.scale = bool(scale)
        keys = jax.random.split(key, 2 * len(self.list_k) + 4)
        idx = 0
        self.up_w, self.up_b = [], []
        for K in self.list_k:            # ConvTranspose2d(1, 1, K, K//2, K//4)
            self.up_w.append(0.1 * jax.random.normal(keys[idx], (K, K), jnp.float32)); idx += 1
            self.up_b.append(0.1 * jax.random.normal(keys[idx], (), jnp.float32)); idx += 1
        C = len(self.list_k) + 1
        self.conv_w = 0.1 * jax.random.normal(keys[idx], (C,), jnp.float32); idx += 1  # Conv2d(C,1,1)
        self.conv_b = 0.1 * jax.random.normal(keys[idx], (), jnp.float32); idx += 1
        if self.scale:                   # ConvTranspose2d(1, 1, 2k, k, k//2)
            self.deconv_w = 0.1 * jax.random.normal(keys[idx], (2 * k, 2 * k), jnp.float32); idx += 1
            self.deconv_b = 0.1 * jax.random.normal(keys[idx], (), jnp.float32); idx += 1

    def __call__(self, x, list_x):
        # x: (N, 1, H, W); list_x[i]: (N, 1, H/(K_i/2), W/(K_i/2))
        N, _, H, W = (int(d) for d in x.shape)
        n_side = len(list_x)
        assert n_side == len(self.list_k)
        x0 = x[:, 0]                      # free squeeze of the 1-channel axis

        strides = [K // 2 for K in self.list_k]
        pads = [K // 4 for K in self.list_k]
        smem = pl.BlockSpec(memory_space=pltpu.MemorySpace.SMEM)
        cparams = pltpu.CompilerParams(dimension_semantics=("parallel",),
                                       vmem_limit_bytes=_VMEM_LIMIT)

        # ---- Kernel 1: phase-blocked branch upsamples --------------------
        ups = []
        if n_side:
            shapes, in_specs, operands, out_shapes, out_specs = [], [], [], [], []
            for i, xi in enumerate(list_x):
                hi, wi = int(xi.shape[2]), int(xi.shape[3])
                s, p = strides[i], pads[i]
                # Exact xS upsample needs p == s/2 (even stride) and matching sizes.
                assert s % 2 == 0 and p == s // 2, "list_k entries must be divisible by 4"
                assert hi * s == H and wi * s == W, "side input must upsample to x's size"
                shapes.append((hi, wi))
                # Zero-pad by 1 in the wrapper: removes the in-kernel zero-fill
                # + store/load round trip of the old pad_ref staging.
                operands.append(jnp.pad(xi[:, 0], ((0, 0), (1, 1), (1, 1))))
                in_specs.append(pl.BlockSpec((None, hi + 2, wi + 2),
                                             lambda n: (n, 0, 0)))
            for i in range(n_side):
                operands.append(jnp.reshape(self.up_w[i], (-1,)))   # flat 1-D SMEM
                in_specs.append(smem)
            for i in range(n_side):
                operands.append(jnp.reshape(self.up_b[i], (1,)))
                in_specs.append(smem)
            for i in range(n_side):
                s = strides[i]; hi, wi = shapes[i]
                out_shapes.append(jax.ShapeDtypeStruct((N, s * s, hi, wi), jnp.float32))
                out_specs.append(pl.BlockSpec((None, s * s, hi, wi),
                                              lambda n: (n, 0, 0, 0)))

            phase_outs = pl.pallas_call(
                _build_upsample_kernel(strides, pads, shapes),
                out_shape=tuple(out_shapes),
                grid=(N,),
                in_specs=in_specs,
                out_specs=tuple(out_specs),
                compiler_params=cparams,
            )(*operands)
            if not isinstance(phase_outs, (tuple, list)):
                phase_outs = (phase_outs,)
            for i in range(n_side):
                s = strides[i]; hi, wi = shapes[i]
                ups.append(_interleave_phases(phase_outs[i], s, hi, wi))

        # ---- Kernel 2: 1x1 fusion conv + final deconv ---------------------
        operands2 = [x0] + ups
        in_specs2 = [pl.BlockSpec((None, H, W), lambda n: (n, 0, 0))
                     for _ in range(1 + n_side)]
        operands2.append(self.conv_w); in_specs2.append(smem)
        operands2.append(jnp.reshape(self.conv_b, (1,))); in_specs2.append(smem)
        scratch = []
        if self.scale:
            k = self.k
            assert k % 2 == 0, "scale path assumes even k (padding == k/2)"
            operands2.append(jnp.reshape(self.deconv_w, (-1,))); in_specs2.append(smem)
            operands2.append(jnp.reshape(self.deconv_b, (1,))); in_specs2.append(smem)
            out_shape2 = jax.ShapeDtypeStruct((N, k * k, H, W), jnp.float32)
            out_spec2 = pl.BlockSpec((None, k * k, H, W), lambda n: (n, 0, 0, 0))
            # Tile-rounded scratch for the fused map's zero ring.
            Hp = -(-(H + 2) // 8) * 8
            Wp = max(128, -(-(W + 2) // 128) * 128)
            scratch = [pltpu.VMEM((Hp, Wp), jnp.float32)]
        else:
            out_shape2 = jax.ShapeDtypeStruct((N, H, W), jnp.float32)
            out_spec2 = pl.BlockSpec((None, H, W), lambda n: (n, 0, 0))

        out = pl.pallas_call(
            _build_fuse_deconv_kernel(n_side, self.k, self.scale, H, W),
            out_shape=out_shape2,
            grid=(N,),
            in_specs=in_specs2,
            out_specs=out_spec2,
            scratch_shapes=scratch,
            compiler_params=cparams,
        )(*operands2)

        if self.scale:
            out = _interleave_phases(out, self.k, H, W)
        return out[:, None]                                # NCHW, 1 channel


# ---------------------------------------------------------------------------
# FusionLayer port (learned weighted sum of the side outputs)
# ---------------------------------------------------------------------------

def _build_fusion_kernel(nums):
    def kernel(x_ref, w_ref, o_ref):
        acc = w_ref[0] * x_ref[0]
        for i in range(1, nums):
            acc = acc + w_ref[i] * x_ref[i]
        o_ref[...] = acc
    return kernel


class FusionLayerPallas:
    def __init__(self, nums=6):
        self.nums = int(nums)
        self.weights = jnp.full((self.nums,), 1.0 / self.nums, jnp.float32)

    def __call__(self, xs):
        assert len(xs) == self.nums
        stacked = jnp.stack([xi[:, 0] for xi in xs], axis=1)   # (N, nums, H, W)
        N, C, H, W = (int(d) for d in stacked.shape)
        out = pl.pallas_call(
            _build_fusion_kernel(self.nums),
            out_shape=jax.ShapeDtypeStruct((N, H, W), jnp.float32),
            grid=(N,),
            in_specs=[pl.BlockSpec((None, C, H, W), lambda n: (n, 0, 0, 0)),
                      pl.BlockSpec(memory_space=pltpu.MemorySpace.SMEM)],
            out_specs=pl.BlockSpec((None, H, W), lambda n: (n, 0, 0)),
            compiler_params=pltpu.CompilerParams(
                dimension_semantics=("parallel",),
                vmem_limit_bytes=_VMEM_LIMIT),
        )(stacked, self.weights)
        return out[:, None]


# ---------------------------------------------------------------------------
# Pure-JAX references (match PyTorch ConvTranspose2d / ConcatLayer semantics)
# ---------------------------------------------------------------------------

def _ref_conv_transpose(x, w, b, stride, pad):
    K = w.shape[0]
    wf = jnp.asarray(w, jnp.float32)[::-1, ::-1][None, None]
    out = jax.lax.conv_general_dilated(
        x, wf, window_strides=(1, 1),
        padding=[(K - 1 - pad, K - 1 - pad)] * 2,
        lhs_dilation=(stride, stride),
        dimension_numbers=("NCHW", "OIHW", "NCHW"),
        precision=jax.lax.Precision.HIGHEST)
    return out + b


def _ref_concat_forward(layer, x, list_x):
    elems = [x]
    for i, xi in enumerate(list_x):
        K = layer.list_k[i]
        elems.append(_ref_conv_transpose(xi, layer.up_w[i], layer.up_b[i], K // 2, K // 4))
    fused = layer.conv_b
    for c, e in enumerate(elems):
        fused = fused + layer.conv_w[c] * e
    if layer.scale:
        return _ref_conv_transpose(fused, layer.deconv_w, layer.deconv_b,
                                   layer.k, layer.k // 2)
    return fused


# ---------------------------------------------------------------------------

if __name__ == "__main__":
    key = jax.random.PRNGKey(0)
    k_x, k_l0, k_l1, k_params, k_f = jax.random.split(key, 5)

    list_k = [4, 8]
    k = 2
    N, H, W = 2, 16, 16

    x = jax.random.normal(k_x, (N, 1, H, W), jnp.float32)
    list_x = [
        jax.random.normal(k_l0, (N, 1, H // 2, W // 2), jnp.float32),
        jax.random.normal(k_l1, (N, 1, H // 4, W // 4), jnp.float32),
    ]

    # ConcatLayer, scale=True (upsamples x2 at the end)
    layer = ConcatLayerPallas(list_k, k, scale=True, key=k_params)
    out = jax.block_until_ready(jax.jit(lambda xx, lx: layer(xx, lx))(x, list_x))
    assert out.shape == (N, 1, H * k, W * k), out.shape
    ref = _ref_concat_forward(layer, x, list_x)
    np.testing.assert_allclose(np.asarray(out), np.asarray(ref), rtol=1e-4, atol=1e-4)

    # ConcatLayer, scale=False path
    layer2 = ConcatLayerPallas(list_k, k, scale=False, key=k_params)
    out2 = jax.block_until_ready(jax.jit(lambda xx, lx: layer2(xx, lx))(x, list_x))
    assert out2.shape == (N, 1, H, W), out2.shape
    ref2 = _ref_concat_forward(layer2, x, list_x)
    np.testing.assert_allclose(np.asarray(out2), np.asarray(ref2), rtol=1e-4, atol=1e-4)

    # FusionLayer over 6 synthetic side outputs at the final resolution
    nums = 6
    fuse = FusionLayerPallas(nums)
    fkeys = jax.random.split(k_f, nums)
    maps = [jax.random.normal(fkeys[i], (N, 1, H * k, W * k), jnp.float32)
            for i in range(nums)]
    fused_out = jax.block_until_ready(jax.jit(lambda ms: fuse(ms))(maps))
    ref_f = sum(fuse.weights[i] * maps[i] for i in range(nums))
    np.testing.assert_allclose(np.asarray(fused_out), np.asarray(ref_f),
                               rtol=1e-5, atol=1e-5)

    print("KERNEL_OK")
</pallas_src>

<mosaic_0001>
module attributes {stable_mosaic.version = 11 : i64} {
  func.func @kernel(%arg0: i32, %arg1: memref<1x10x10xf32, #tpu.memory_space<vmem>>, %arg2: memref<1x6x6xf32, #tpu.memory_space<vmem>>, %arg3: memref<16xf32, #tpu.memory_space<smem>>, %arg4: memref<64xf32, #tpu.memory_space<smem>>, %arg5: memref<1xf32, #tpu.memory_space<smem>>, %arg6: memref<1xf32, #tpu.memory_space<smem>>, %arg7: memref<1x4x8x8xf32, #tpu.memory_space<vmem>>, %arg8: memref<1x16x4x4xf32, #tpu.memory_space<vmem>>) attributes {dimension_semantics = [#tpu.dimension_semantics<parallel>], iteration_bounds = array<i64: 2>, scalar_prefetch = 0 : i64, scratch_operands = 0 : i64, tpu.core_type = #tpu.core_type<tc>, window_params = [{transform_indices = @transform_0, window_bounds = array<i64: 1, 10, 10>}, {transform_indices = @transform_1, window_bounds = array<i64: 1, 6, 6>}, {transform_indices = @transform_2, window_bounds = array<i64: 16>}, {transform_indices = @transform_3, window_bounds = array<i64: 64>}, {transform_indices = @transform_4, window_bounds = array<i64: 1>}, {transform_indices = @transform_5, window_bounds = array<i64: 1>}, {transform_indices = @transform_6, window_bounds = array<i64: 1, 4, 8, 8>}, {transform_indices = @transform_7, window_bounds = array<i64: 1, 16, 4, 4>}]} {
    %c0 = arith.constant 0 : index
    %0 = memref.load %arg5[%c0] : memref<1xf32, #tpu.memory_space<smem>>
    %c0_0 = arith.constant 0 : index
    %c1 = arith.constant 1 : index
    %c1_1 = arith.constant 1 : index
    %1 = vector.load %arg1[%c0_0, %c1, %c1_1] : memref<1x10x10xf32, #tpu.memory_space<vmem>>, vector<1x8x8xf32>
    %2 = vector.shape_cast %1 : vector<1x8x8xf32> to vector<8x8xf32>
    %c5 = arith.constant 5 : index
    %3 = memref.load %arg3[%c5] : memref<16xf32, #tpu.memory_space<smem>>
    %4 = vector.broadcast %3 : f32 to vector<8x8xf32>
    %5 = arith.mulf %4, %2 : vector<8x8xf32>
    %c0_2 = arith.constant 0 : index
    %c1_3 = arith.constant 1 : index
    %c0_4 = arith.constant 0 : index
    %6 = vector.load %arg1[%c0_2, %c1_3, %c0_4] : memref<1x10x10xf32, #tpu.memory_space<vmem>>, vector<1x8x8xf32>
    %7 = vector.shape_cast %6 : vector<1x8x8xf32> to vector<8x8xf32>
    %c7 = arith.constant 7 : index
    %8 = memref.load %arg3[%c7] : memref<16xf32, #tpu.memory_space<smem>>
    %9 = vector.broadcast %8 : f32 to vector<8x8xf32>
    %10 = arith.mulf %9, %7 : vector<8x8xf32>
    %11 = arith.addf %5, %10 : vector<8x8xf32>
    %c0_5 = arith.constant 0 : index
    %c0_6 = arith.constant 0 : index
    %c1_7 = arith.constant 1 : index
    %12 = vector.load %arg1[%c0_5, %c0_6, %c1_7] : memref<1x10x10xf32, #tpu.memory_space<vmem>>, vector<1x8x8xf32>
    %13 = vector.shape_cast %12 : vector<1x8x8xf32> to vector<8x8xf32>
    %c13 = arith.constant 13 : index
    %14 = memref.load %arg3[%c13] : memref<16xf32, #tpu.memory_space<smem>>
    %15 = vector.broadcast %14 : f32 to vector<8x8xf32>
    %16 = arith.mulf %15, %13 : vector<8x8xf32>
    %17 = arith.addf %11, %16 : vector<8x8xf32>
    %c0_8 = arith.constant 0 : index
    %c0_9 = arith.constant 0 : index
    %c0_10 = arith.constant 0 : index
    %18 = vector.load %arg1[%c0_8, %c0_9, %c0_10] : memref<1x10x10xf32, #tpu.memory_space<vmem>>, vector<1x8x8xf32>
    %19 = vector.shape_cast %18 : vector<1x8x8xf32> to vector<8x8xf32>
    %c15 = arith.constant 15 : index
    %20 = memref.load %arg3[%c15] : memref<16xf32, #tpu.memory_space<smem>>
    %21 = vector.broadcast %20 : f32 to vector<8x8xf32>
    %22 = arith.mulf %21, %19 : vector<8x8xf32>
    %23 = arith.addf %17, %22 : vector<8x8xf32>
    %24 = vector.broadcast %0 : f32 to vector<8x8xf32>
    %25 = arith.addf %23, %24 : vector<8x8xf32>
    %c0_11 = arith.constant 0 : index
    %c0_12 = arith.constant 0 : index
    %c0_13 = arith.constant 0 : index
    %c0_14 = arith.constant 0 : index
    %26 = vector.load %arg7[%c0_11, %c0_12, %c0_13, %c0_14] : memref<1x4x8x8xf32, #tpu.memory_space<vmem>>, vector<1x1x8x8xf32>
    %27 = vector.shape_cast %26 : vector<1x1x8x8xf32> to vector<8x8xf32>
    %28 = vector.shape_cast %25 : vector<8x8xf32> to vector<1x1x8x8xf32>
    tpu.vector_store %arg7[%c0_11, %c0_12, %c0_13, %c0_14], %28 {strides = array<i32>} : memref<1x4x8x8xf32, #tpu.memory_space<vmem>>, vector<1x1x8x8xf32>,
    %c0_15 = arith.constant 0 : index
    %c1_16 = arith.constant 1 : index
    %c2 = arith.constant 2 : index
    %29 = vector.load %arg1[%c0_15, %c1_16, %c2] : memref<1x10x10xf32, #tpu.memory_space<vmem>>, vector<1x8x8xf32>
    %30 = vector.shape_cast %29 : vector<1x8x8xf32> to vector<8x8xf32>
    %c4 = arith.constant 4 : index
    %31 = memref.load %arg3[%c4] : memref<16xf32, #tpu.memory_space<smem>>
    %32 = vector.broadcast %31 : f32 to vector<8x8xf32>
    %33 = arith.mulf %32, %30 : vector<8x8xf32>
    %c6 = arith.constant 6 : index
    %34 = memref.load %arg3[%c6] : memref<16xf32, #tpu.memory_space<smem>>
    %35 = vector.broadcast %34 : f32 to vector<8x8xf32>
    %36 = arith.mulf %35, %2 : vector<8x8xf32>
    %37 = arith.addf %33, %36 : vector<8x8xf32>
    %c0_17 = arith.constant 0 : index
    %c0_18 = arith.constant 0 : index
    %c2_19 = arith.constant 2 : index
    %38 = vector.load %arg1[%c0_17, %c0_18, %c2_19] : memref<1x10x10xf32, #tpu.memory_space<vmem>>, vector<1x8x8xf32>
    %39 = vector.shape_cast %38 : vector<1x8x8xf32> to vector<8x8xf32>
    %c12 = arith.constant 12 : index
    %40 = memref.load %arg3[%c12] : memref<16xf32, #tpu.memory_space<smem>>
    %41 = vector.broadcast %40 : f32 to vector<8x8xf32>
    %42 = arith.mulf %41, %39 : vector<8x8xf32>
    %43 = arith.addf %37, %42 : vector<8x8xf32>
    %c14 = arith.constant 14 : index
    %44 = memref.load %arg3[%c14] : memref<16xf32, #tpu.memory_space<smem>>
    %45 = vector.broadcast %44 : f32 to vector<8x8xf32>
    %46 = arith.mulf %45, %13 : vector<8x8xf32>
    %47 = arith.addf %43, %46 : vector<8x8xf32>
    %48 = vector.broadcast %0 : f32 to vector<8x8xf32>
    %49 = arith.addf %47, %48 : vector<8x8xf32>
    %c0_20 = arith.constant 0 : index
    %c1_21 = arith.constant 1 : index
    %c0_22 = arith.constant 0 : index
    %c0_23 = arith.constant 0 : index
    %50 = vector.load %arg7[%c0_20, %c1_21, %c0_22, %c0_23] : memref<1x4x8x8xf32, #tpu.memory_space<vmem>>, vector<1x1x8x8xf32>
    %51 = vector.shape_cast %50 : vector<1x1x8x8xf32> to vector<8x8xf32>
    %52 = vector.shape_cast %49 : vector<8x8xf32> to vector<1x1x8x8xf32>
    tpu.vector_store %arg7[%c0_20, %c1_21, %c0_22, %c0_23], %52 {strides = array<i32>} : memref<1x4x8x8xf32, #tpu.memory_space<vmem>>, vector<1x1x8x8xf32>,
    %c0_24 = arith.constant 0 : index
    %c2_25 = arith.constant 2 : index
    %c1_26 = arith.constant 1 : index
    %53 = vector.load %arg1[%c0_24, %c2_25, %c1_26] : memref<1x10x10xf32, #tpu.memory_space<vmem>>, vector<1x8x8xf32>
    %54 = vector.shape_cast %53 : vector<1x8x8xf32> to vector<8x8xf32>
    %c1_27 = arith.constant 1 : index
    %55 = memref.load %arg3[%c1_27] : memref<16xf32, #tpu.memory_space<smem>>
    %56 = vector.broadcast %55 : f32 to vector<8x8xf32>
    %57 = arith.mulf %56, %54 : vector<8x8xf32>
    %c0_28 = arith.constant 0 : index
    %c2_29 = arith.constant 2 : index
    %c0_30 = arith.constant 0 : index
    %58 = vector.load %arg1[%c0_28, %c2_29, %c0_30] : memref<1x10x10xf32, #tpu.memory_space<vmem>>, vector<1x8x8xf32>
    %59 = vector.shape_cast %58 : vector<1x8x8xf32> to vector<8x8xf32>
    %c3 = arith.constant 3 : index
    %60 = memref.load %arg3[%c3] : memref<16xf32, #tpu.memory_space<smem>>
    %61 = vector.broadcast %60 : f32 to vector<8x8xf32>
    %62 = arith.mulf %61, %59 : vector<8x8xf32>
    %63 = arith.addf %57, %62 : vector<8x8xf32>
    %c9 = arith.constant 9 : index
    %64 = memref.load %arg3[%c9] : memref<16xf32, #tpu.memory_space<smem>>
    %65 = vector.broadcast %64 : f32 to vector<8x8xf32>
    %66 = arith.mulf %65, %2 : vector<8x8xf32>
    %67 = arith.addf %63, %66 : vector<8x8xf32>
    %c11 = arith.constant 11 : index
    %68 = memref.load %arg3[%c11] : memref<16xf32, #tpu.memory_space<smem>>
    %69 = vector.broadcast %68 : f32 to vector<8x8xf32>
    %70 = arith.mulf %69, %7 : vector<8x8xf32>
    %71 = arith.addf %67, %70 : vector<8x8xf32>
    %72 = vector.broadcast %0 : f32 to vector<8x8xf32>
    %73 = arith.addf %71, %72 : vector<8x8xf32>
    %c0_31 = arith.constant 0 : index
    %c2_32 = arith.constant 2 : index
    %c0_33 = arith.constant 0 : index
    %c0_34 = arith.constant 0 : index
    %74 = vector.load %arg7[%c0_31, %c2_32, %c0_33, %c0_34] : memref<1x4x8x8xf32, #tpu.memory_space<vmem>>, vector<1x1x8x8xf32>
    %75 = vector.shape_cast %74 : vector<1x1x8x8xf32> to vector<8x8xf32>
    %76 = vector.shape_cast %73 : vector<8x8xf32> to vector<1x1x8x8xf32>
    tpu.vector_store %arg7[%c0_31, %c2_32, %c0_33, %c0_34], %76 {strides = array<i32>} : memref<1x4x8x8xf32, #tpu.memory_space<vmem>>, vector<1x1x8x8xf32>,
    %c0_35 = arith.constant 0 : index
    %c2_36 = arith.constant 2 : index
    %c2_37 = arith.constant 2 : index
    %77 = vector.load %arg1[%c0_35, %c2_36, %c2_37] : memref<1x10x10xf32, #tpu.memory_space<vmem>>, vector<1x8x8xf32>
    %78 = vector.shape_cast %77 : vector<1x8x8xf32> to vector<8x8xf32>
    %c0_38 = arith.constant 0 : index
    %79 = memref.load %arg3[%c0_38] : memref<16xf32, #tpu.memory_space<smem>>
    %80 = vector.broadcast %79 : f32 to vector<8x8xf32>
    %81 = arith.mulf %80, %78 : vector<8x8xf32>
    %c2_39 = arith.constant 2 : index
    %82 = memref.load %arg3[%c2_39] : memref<16xf32, #tpu.memory_space<smem>>
    %83 = vector.broadcast %82 : f32 to vector<8x8xf32>
    %84 = arith.mulf %83, %54 : vector<8x8xf32>
    %85 = arith.addf %81, %84 : vector<8x8xf32>
    %c8 = arith.constant 8 : index
    %86 = memref.load %arg3[%c8] : memref<16xf32, #tpu.memory_space<smem>>
    %87 = vector.broadcast %86 : f32 to vector<8x8xf32>
    %88 = arith.mulf %87, %30 : vector<8x8xf32>
    %89 = arith.addf %85, %88 : vector<8x8xf32>
    %c10 = arith.constant 10 : index
    %90 = memref.load %arg3[%c10] : memref<16xf32, #tpu.memory_space<smem>>
    %91 = vector.broadcast %90 : f32 to vector<8x8xf32>
    %92 = arith.mulf %91, %2 : vector<8x8xf32>
    %93 = arith.addf %89, %92 : vector<8x8xf32>
    %94 = vector.broadcast %0 : f32 to vector<8x8xf32>
    %95 = arith.addf %93, %94 : vector<8x8xf32>
    %c0_40 = arith.constant 0 : index
    %c3_41 = arith.constant 3 : index
    %c0_42 = arith.constant 0 : index
    %c0_43 = arith.constant 0 : index
    %96 = vector.load %arg7[%c0_40, %c3_41, %c0_42, %c0_43] : memref<1x4x8x8xf32, #tpu.memory_space<vmem>>, vector<1x1x8x8xf32>
    %97 = vector.shape_cast %96 : vector<1x1x8x8xf32> to vector<8x8xf32>
    %98 = vector.shape_cast %95 : vector<8x8xf32> to vector<1x1x8x8xf32>
    tpu.vector_store %arg7[%c0_40, %c3_41, %c0_42, %c0_43], %98 {strides = array<i32>} : memref<1x4x8x8xf32, #tpu.memory_space<vmem>>, vector<1x1x8x8xf32>,
    %c0_44 = arith.constant 0 : index
    %99 = memref.load %arg6[%c0_44] : memref<1xf32, #tpu.memory_space<smem>>
    %c0_45 = arith.constant 0 : index
    %c1_46 = arith.constant 1 : index
    %c1_47 = arith.constant 1 : index
    %100 = vector.load %arg2[%c0_45, %c1_46, %c1_47] : memref<1x6x6xf32, #tpu.memory_space<vmem>>, vector<1x4x4xf32>
    %101 = vector.shape_cast %100 : vector<1x4x4xf32> to vector<4x4xf32>
    %c18 = arith.constant 18 : index
    %102 = memref.load %arg4[%c18] : memref<64xf32, #tpu.memory_space<smem>>
    %103 = vector.broadcast %102 : f32 to vector<4x4xf32>
    %104 = arith.mulf %103, %101 : vector<4x4xf32>
    %c0_48 = arith.constant 0 : index
    %c1_49 = arith.constant 1 : index
    %c0_50 = arith.constant 0 : index
    %105 = vector.load %arg2[%c0_48, %c1_49, %c0_50] : memref<1x6x6xf32, #tpu.memory_space<vmem>>, vector<1x4x4xf32>
    %106 = vector.shape_cast %105 : vector<1x4x4xf32> to vector<4x4xf32>
    %c22 = arith.constant 22 : index
    %107 = memref.load %arg4[%c22] : memref<64xf32, #tpu.memory_space<smem>>
    %108 = vector.broadcast %107 : f32 to vector<4x4xf32>
    %109 = arith.mulf %108, %106 : vector<4x4xf32>
    %110 = arith.addf %104, %109 : vector<4x4xf32>
    %c0_51 = arith.constant 0 : index
    %c0_52 = arith.constant 0 : index
    %c1_53 = arith.constant 1 : index
    %111 = vector.load %arg2[%c0_51, %c0_52, %c1_53] : memref<1x6x6xf32, #tpu.memory_space<vmem>>, vector<1x4x4xf32>
    %112 = vector.shape_cast %111 : vector<1x4x4xf32> to vector<4x4xf32>
    %c50 = arith.constant 50 : index
    %113 = memref.load %arg4[%c50] : memref<64xf32, #tpu.memory_space<smem>>
    %114 = vector.broadcast %113 : f32 to vector<4x4xf32>
    %115 = arith.mulf %114, %112 : vector<4x4xf32>
    %116 = arith.addf %110, %115 : vector<4x4xf32>
    %c0_54 = arith.constant 0 : index
    %c0_55 = arith.constant 0 : index
    %c0_56 = arith.constant 0 : index
    %117 = vector.load %arg2[%c0_54, %c0_55, %c0_56] : memref<1x6x6xf32, #tpu.memory_space<vmem>>, vector<1x4x4xf32>
    %118 = vector.shape_cast %117 : vector<1x4x4xf32> to vector<4x4xf32>
    %c54 = arith.constant 54 : index
    %119 = memref.load %arg4[%c54] : memref<64xf32, #tpu.memory_space<smem>>
    %120 = vector.broadcast %119 : f32 to vector<4x4xf32>
    %121 = arith.mulf %120, %118 : vector<4x4xf32>
    %122 = arith.addf %116, %121 : vector<4x4xf32>
    %123 = vector.broadcast %99 : f32 to vector<4x4xf32>
    %124 = arith.addf %122, %123 : vector<4x4xf32>
    %c0_57 = arith.constant 0 : index
    %c0_58 = arith.constant 0 : index
    %c0_59 = arith.constant 0 : index
    %c0_60 = arith.constant 0 : index
    %125 = vector.load %arg8[%c0_57, %c0_58, %c0_59, %c0_60] : memref<1x16x4x4xf32, #tpu.memory_space<vmem>>, vector<1x1x4x4xf32>
    %126 = vector.shape_cast %125 : vector<1x1x4x4xf32> to vector<4x4xf32>
    %127 = vector.shape_cast %124 : vector<4x4xf32> to vector<1x1x4x4xf32>
    tpu.vector_store %arg8[%c0_57, %c0_58, %c0_59, %c0_60], %127 {strides = array<i32>} : memref<1x16x4x4xf32, #tpu.memory_space<vmem>>, vector<1x1x4x4xf32>,
    %c19 = arith.constant 19 : index
    %128 = memref.load %arg4[%c19] : memref<64xf32, #tpu.memory_space<smem>>
    %129 = vector.broadcast %128 : f32 to vector<4x4xf32>
    %130 = arith.mulf %129, %101 : vector<4x4xf32>
    %c23 = arith.constant 23 : index
    %131 = memref.load %arg4[%c23] : memref<64xf32, #tpu.memory_space<smem>>
    %132 = vector.broadcast %131 : f32 to vector<4x4xf32>
    %133 = arith.mulf %132, %106 : vector<4x4xf32>
    %134 = arith.addf %130, %133 : vector<4x4xf32>
    %c51 = arith.constant 51 : index
    %135 = memref.load %arg4[%c51] : memref<64xf32, #tpu.memory_space<smem>>
    %136 = vector.broadcast %135 : f32 to vector<4x4xf32>
    %137 = arith.mulf %136, %112 : vector<4x4xf32>
    %138 = arith.addf %134, %137 : vector<4x4xf32>
    %c55 = arith.constant 55 : index
    %139 = memref.load %arg4[%c55] : memref<64xf32, #tpu.memory_space<smem>>
    %140 = vector.broadcast %139 : f32 to vector<4x4xf32>
    %141 = arith.mulf %140, %118 : vector<4x4xf32>
    %142 = arith.addf %138, %141 : vector<4x4xf32>
    %143 = vector.broadcast %99 : f32 to vector<4x4xf32>
    %144 = arith.addf %142, %143 : vector<4x4xf32>
    %c0_61 = arith.constant 0 : index
    %c1_62 = arith.constant 1 : index
    %c0_63 = arith.constant 0 : index
    %c0_64 = arith.constant 0 : index
    %145 = vector.load %arg8[%c0_61, %c1_62, %c0_63, %c0_64] : memref<1x16x4x4xf32, #tpu.memory_space<vmem>>, vector<1x1x4x4xf32>
    %146 = vector.shape_cast %145 : vector<1x1x4x4xf32> to vector<4x4xf32>
    %147 = vector.shape_cast %144 : vector<4x4xf32> to vector<1x1x4x4xf32>
    tpu.vector_store %arg8[%c0_61, %c1_62, %c0_63, %c0_64], %147 {strides = array<i32>} : memref<1x16x4x4xf32, #tpu.memory_space<vmem>>, vector<1x1x4x4xf32>,
    %c0_65 = arith.constant 0 : index
    %c1_66 = arith.constant 1 : index
    %c2_67 = arith.constant 2 : index
    %148 = vector.load %arg2[%c0_65, %c1_66, %c2_67] : memref<1x6x6xf32, #tpu.memory_space<vmem>>, vector<1x4x4xf32>
    %149 = vector.shape_cast %148 : vector<1x4x4xf32> to vector<4x4xf32>
    %c16 = arith.constant 16 : index
    %150 = memref.load %arg4[%c16] : memref<64xf32, #tpu.memory_space<smem>>
    %151 = vector.broadcast %150 : f32 to vector<4x4xf32>
    %152 = arith.mulf %151, %149 : vector<4x4xf32>
    %c20 = arith.constant 20 : index
    %153 = memref.load %arg4[%c20] : memref<64xf32, #tpu.memory_space<smem>>
    %154 = vector.broadcast %153 : f32 to vector<4x4xf32>
    %155 = arith.mulf %154, %101 : vector<4x4xf32>
    %156 = arith.addf %152, %155 : vector<4x4xf32>
    %c0_68 = arith.constant 0 : index
    %c0_69 = arith.constant 0 : index
    %c2_70 = arith.constant 2 : index
    %157 = vector.load %arg2[%c0_68, %c0_69, %c2_70] : memref<1x6x6xf32, #tpu.memory_space<vmem>>, vector<1x4x4xf32>
    %158 = vector.shape_cast %157 : vector<1x4x4xf32> to vector<4x4xf32>
    %c48 = arith.constant 48 : index
    %159 = memref.load %arg4[%c48] : memref<64xf32, #tpu.memory_space<smem>>
    %160 = vector.broadcast %159 : f32 to vector<4x4xf32>
    %161 = arith.mulf %160, %158 : vector<4x4xf32>
    %162 = arith.addf %156, %161 : vector<4x4xf32>
    %c52 = arith.constant 52 : index
    %163 = memref.load %arg4[%c52] : memref<64xf32, #tpu.memory_space<smem>>
    %164 = vector.broadcast %163 : f32 to vector<4x4xf32>
    %165 = arith.mulf %164, %112 : vector<4x4xf32>
    %166 = arith.addf %162, %165 : vector<4x4xf32>
    %167 = vector.broadcast %99 : f32 to vector<4x4xf32>
    %168 = arith.addf %166, %167 : vector<4x4xf32>
    %c0_71 = arith.constant 0 : index
    %c2_72 = arith.constant 2 : index
    %c0_73 = arith.constant 0 : index
    %c0_74 = arith.constant 0 : index
    %169 = vector.load %arg8[%c0_71, %c2_72, %c0_73, %c0_74] : memref<1x16x4x4xf32, #tpu.memory_space<vmem>>, vector<1x1x4x4xf32>
    %170 = vector.shape_cast %169 : vector<1x1x4x4xf32> to vector<4x4xf32>
    %171 = vector.shape_cast %168 : vector<4x4xf32> to vector<1x1x4x4xf32>
    tpu.vector_store %arg8[%c0_71, %c2_72, %c0_73, %c0_74], %171 {strides = array<i32>} : memref<1x16x4x4xf32, #tpu.memory_space<vmem>>, vector<1x1x4x4xf32>,
    %c17 = arith.constant 17 : index
    %172 = memref.load %arg4[%c17] : memref<64xf32, #tpu.memory_space<smem>>
    %173 = vector.broadcast %172 : f32 to vector<4x4xf32>
    %174 = arith.mulf %173, %149 : vector<4x4xf32>
    %c21 = arith.constant 21 : index
    %175 = memref.load %arg4[%c21] : memref<64xf32, #tpu.memory_space<smem>>
    %176 = vector.broadcast %175 : f32 to vector<4x4xf32>
    %177 = arith.mulf %176, %101 : vector<4x4xf32>
    %178 = arith.addf %174, %177 : vector<4x4xf32>
    %c49 = arith.constant 49 : index
    %179 = memref.load %arg4[%c49] : memref<64xf32, #tpu.memory_space<smem>>
    %180 = vector.broadcast %179 : f32 to vector<4x4xf32>
    %181 = arith.mulf %180, %158 : vector<4x4xf32>
    %182 = arith.addf %178, %181 : vector<4x4xf32>
    %c53 = arith.constant 53 : index
    %183 = memref.load %arg4[%c53] : memref<64xf32, #tpu.memory_space<smem>>
    %184 = vector.broadcast %183 : f32 to vector<4x4xf32>
    %185 = arith.mulf %184, %112 : vector<4x4xf32>
    %186 = arith.addf %182, %185 : vector<4x4xf32>
    %187 = vector.broadcast %99 : f32 to vector<4x4xf32>
    %188 = arith.addf %186, %187 : vector<4x4xf32>
    %c0_75 = arith.constant 0 : index
    %c3_76 = arith.constant 3 : index
    %c0_77 = arith.constant 0 : index
    %c0_78 = arith.constant 0 : index
    %189 = vector.load %arg8[%c0_75, %c3_76, %c0_77, %c0_78] : memref<1x16x4x4xf32, #tpu.memory_space<vmem>>, vector<1x1x4x4xf32>
    %190 = vector.shape_cast %189 : vector<1x1x4x4xf32> to vector<4x4xf32>
    %191 = vector.shape_cast %188 : vector<4x4xf32> to vector<1x1x4x4xf32>
    tpu.vector_store %arg8[%c0_75, %c3_76, %c0_77, %c0_78], %191 {strides = array<i32>} : memref<1x16x4x4xf32, #tpu.memory_space<vmem>>, vector<1x1x4x4xf32>,
    %c26 = arith.constant 26 : index
    %192 = memref.load %arg4[%c26] : memref<64xf32, #tpu.memory_space<smem>>
    %193 = vector.broadcast %192 : f32 to vector<4x4xf32>
    %194 = arith.mulf %193, %101 : vector<4x4xf32>
    %c30 = arith.constant 30 : index
    %195 = memref.load %arg4[%c30] : memref<64xf32, #tpu.memory_space<smem>>
    %196 = vector.broadcast %195 : f32 to vector<4x4xf32>
    %197 = arith.mulf %196, %106 : vector<4x4xf32>
    %198 = arith.addf %194, %197 : vector<4x4xf32>
    %c58 = arith.constant 58 : index
    %199 = memref.load %arg4[%c58] : memref<64xf32, #tpu.memory_space<smem>>
    %200 = vector.broadcast %199 : f32 to vector<4x4xf32>
    %201 = arith.mulf %200, %112 : vector<4x4xf32>
    %202 = arith.addf %198, %201 : vector<4x4xf32>
    %c62 = arith.constant 62 : index
    %203 = memref.load %arg4[%c62] : memref<64xf32, #tpu.memory_space<smem>>
    %204 = vector.broadcast %203 : f32 to vector<4x4xf32>
    %205 = arith.mulf %204, %118 : vector<4x4xf32>
    %206 = arith.addf %202, %205 : vector<4x4xf32>
    %207 = vector.broadcast %99 : f32 to vector<4x4xf32>
    %208 = arith.addf %206, %207 : vector<4x4xf32>
    %c0_79 = arith.constant 0 : index
    %c4_80 = arith.constant 4 : index
    %c0_81 = arith.constant 0 : index
    %c0_82 = arith.constant 0 : index
    %209 = vector.load %arg8[%c0_79, %c4_80, %c0_81, %c0_82] : memref<1x16x4x4xf32, #tpu.memory_space<vmem>>, vector<1x1x4x4xf32>
    %210 = vector.shape_cast %209 : vector<1x1x4x4xf32> to vector<4x4xf32>
    %211 = vector.shape_cast %208 : vector<4x4xf32> to vector<1x1x4x4xf32>
    tpu.vector_store %arg8[%c0_79, %c4_80, %c0_81, %c0_82], %211 {strides = array<i32>} : memref<1x16x4x4xf32, #tpu.memory_space<vmem>>, vector<1x1x4x4xf32>,
    %c27 = arith.constant 27 : index
    %212 = memref.load %arg4[%c27] : memref<64xf32, #tpu.memory_space<smem>>
    %213 = vector.broadcast %212 : f32 to vector<4x4xf32>
    %214 = arith.mulf %213, %101 : vector<4x4xf32>
    %c31 = arith.constant 31 : index
    %215 = memref.load %arg4[%c31] : memref<64xf32, #tpu.memory_space<smem>>
    %216 = vector.broadcast %215 : f32 to vector<4x4xf32>
    %217 = arith.mulf %216, %106 : vector<4x4xf32>
    %218 = arith.addf %214, %217 : vector<4x4xf32>
    %c59 = arith.constant 59 : index
    %219 = memref.load %arg4[%c59] : memref<64xf32, #tpu.memory_space<smem>>
    %220 = vector.broadcast %219 : f32 to vector<4x4xf32>
    %221 = arith.mulf %220, %112 : vector<4x4xf32>
    %222 = arith.addf %218, %221 : vector<4x4xf32>
    %c63 = arith.constant 63 : index
    %223 = memref.load %arg4[%c63] : memref<64xf32, #tpu.memory_space<smem>>
    %224 = vector.broadcast %223 : f32 to vector<4x4xf32>
    %225 = arith.mulf %224, %118 : vector<4x4xf32>
    %226 = arith.addf %222, %225 : vector<4x4xf32>
    %227 = vector.broadcast %99 : f32 to vector<4x4xf32>
    %228 = arith.addf %226, %227 : vector<4x4xf32>
    %c0_83 = arith.constant 0 : index
    %c5_84 = arith.constant 5 : index
    %c0_85 = arith.constant 0 : index
    %c0_86 = arith.constant 0 : index
    %229 = vector.load %arg8[%c0_83, %c5_84, %c0_85, %c0_86] : memref<1x16x4x4xf32, #tpu.memory_space<vmem>>, vector<1x1x4x4xf32>
    %230 = vector.shape_cast %229 : vector<1x1x4x4xf32> to vector<4x4xf32>
    %231 = vector.shape_cast %228 : vector<4x4xf32> to vector<1x1x4x4xf32>
    tpu.vector_store %arg8[%c0_83, %c5_84, %c0_85, %c0_86], %231 {strides = array<i32>} : memref<1x16x4x4xf32, #tpu.memory_space<vmem>>, vector<1x1x4x4xf32>,
    %c24 = arith.constant 24 : index
    %232 = memref.load %arg4[%c24] : memref<64xf32, #tpu.memory_space<smem>>
    %233 = vector.broadcast %232 : f32 to vector<4x4xf32>
    %234 = arith.mulf %233, %149 : vector<4x4xf32>
    %c28 = arith.constant 28 : index
    %235 = memref.load %arg4[%c28] : memref<64xf32, #tpu.memory_space<smem>>
    %236 = vector.broadcast %235 : f32 to vector<4x4xf32>
    %237 = arith.mulf %236, %101 : vector<4x4xf32>
    %238 = arith.addf %234, %237 : vector<4x4xf32>
    %c56 = arith.constant 56 : index
    %239 = memref.load %arg4[%c56] : memref<64xf32, #tpu.memory_space<smem>>
    %240 = vector.broadcast %239 : f32 to vector<4x4xf32>
    %241 = arith.mulf %240, %158 : vector<4x4xf32>
    %242 = arith.addf %238, %241 : vector<4x4xf32>
    %c60 = arith.constant 60 : index
    %243 = memref.load %arg4[%c60] : memref<64xf32, #tpu.memory_space<smem>>
    %244 = vector.broadcast %243 : f32 to vector<4x4xf32>
    %245 = arith.mulf %244, %112 : vector<4x4xf32>
    %246 = arith.addf %242, %245 : vector<4x4xf32>
    %247 = vector.broadcast %99 : f32 to vector<4x4xf32>
    %248 = arith.addf %246, %247 : vector<4x4xf32>
    %c0_87 = arith.constant 0 : index
    %c6_88 = arith.constant 6 : index
    %c0_89 = arith.constant 0 : index
    %c0_90 = arith.constant 0 : index
    %249 = vector.load %arg8[%c0_87, %c6_88, %c0_89, %c0_90] : memref<1x16x4x4xf32, #tpu.memory_space<vmem>>, vector<1x1x4x4xf32>
    %250 = vector.shape_cast %249 : vector<1x1x4x4xf32> to vector<4x4xf32>
    %251 = vector.shape_cast %248 : vector<4x4xf32> to vector<1x1x4x4xf32>
    tpu.vector_store %arg8[%c0_87, %c6_88, %c0_89, %c0_90], %251 {strides = array<i32>} : memref<1x16x4x4xf32, #tpu.memory_space<vmem>>, vector<1x1x4x4xf32>,
    %c25 = arith.constant 25 : index
    %252 = memref.load %arg4[%c25] : memref<64xf32, #tpu.memory_space<smem>>
    %253 = vector.broadcast %252 : f32 to vector<4x4xf32>
    %254 = arith.mulf %253, %149 : vector<4x4xf32>
    %c29 = arith.constant 29 : index
    %255 = memref.load %arg4[%c29] : memref<64xf32, #tpu.memory_space<smem>>
    %256 = vector.broadcast %255 : f32 to vector<4x4xf32>
    %257 = arith.mulf %256, %101 : vector<4x4xf32>
    %258 = arith.addf %254, %257 : vector<4x4xf32>
    %c57 = arith.constant 57 : index
    %259 = memref.load %arg4[%c57] : memref<64xf32, #tpu.memory_space<smem>>
    %260 = vector.broadcast %259 : f32 to vector<4x4xf32>
    %261 = arith.mulf %260, %158 : vector<4x4xf32>
    %262 = arith.addf %258, %261 : vector<4x4xf32>
    %c61 = arith.constant 61 : index
    %263 = memref.load %arg4[%c61] : memref<64xf32, #tpu.memory_space<smem>>
    %264 = vector.broadcast %263 : f32 to vector<4x4xf32>
    %265 = arith.mulf %264, %112 : vector<4x4xf32>
    %266 = arith.addf %262, %265 : vector<4x4xf32>
    %267 = vector.broadcast %99 : f32 to vector<4x4xf32>
    %268 = arith.addf %266, %267 : vector<4x4xf32>
    %c0_91 = arith.constant 0 : index
    %c7_92 = arith.constant 7 : index
    %c0_93 = arith.constant 0 : index
    %c0_94 = arith.constant 0 : index
    %269 = vector.load %arg8[%c0_91, %c7_92, %c0_93, %c0_94] : memref<1x16x4x4xf32, #tpu.memory_space<vmem>>, vector<1x1x4x4xf32>
    %270 = vector.shape_cast %269 : vector<1x1x4x4xf32> to vector<4x4xf32>
    %271 = vector.shape_cast %268 : vector<4x4xf32> to vector<1x1x4x4xf32>
    tpu.vector_store %arg8[%c0_91, %c7_92, %c0_93, %c0_94], %271 {strides = array<i32>} : memref<1x16x4x4xf32, #tpu.memory_space<vmem>>, vector<1x1x4x4xf32>,
    %c0_95 = arith.constant 0 : index
    %c2_96 = arith.constant 2 : index
    %c1_97 = arith.constant 1 : index
    %272 = vector.load %arg2[%c0_95, %c2_96, %c1_97] : memref<1x6x6xf32, #tpu.memory_space<vmem>>, vector<1x4x4xf32>
    %273 = vector.shape_cast %272 : vector<1x4x4xf32> to vector<4x4xf32>
    %c2_98 = arith.constant 2 : index
    %274 = memref.load %arg4[%c2_98] : memref<64xf32, #tpu.memory_space<smem>>
    %275 = vector.broadcast %274 : f32 to vector<4x4xf32>
    %276 = arith.mulf %275, %273 : vector<4x4xf32>
    %c0_99 = arith.constant 0 : index
    %c2_100 = arith.constant 2 : index
    %c0_101 = arith.constant 0 : index
    %277 = vector.load %arg2[%c0_99, %c2_100, %c0_101] : memref<1x6x6xf32, #tpu.memory_space<vmem>>, vector<1x4x4xf32>
    %278 = vector.shape_cast %277 : vector<1x4x4xf32> to vector<4x4xf32>
    %c6_102 = arith.constant 6 : index
    %279 = memref.load %arg4[%c6_102] : memref<64xf32, #tpu.memory_space<smem>>
    %280 = vector.broadcast %279 : f32 to vector<4x4xf32>
    %281 = arith.mulf %280, %278 : vector<4x4xf32>
    %282 = arith.addf %276, %281 : vector<4x4xf32>
    %c34 = arith.constant 34 : index
    %283 = memref.load %arg4[%c34] : memref<64xf32, #tpu.memory_space<smem>>
    %284 = vector.broadcast %283 : f32 to vector<4x4xf32>
    %285 = arith.mulf %284, %101 : vector<4x4xf32>
    %286 = arith.addf %282, %285 : vector<4x4xf32>
    %c38 = arith.constant 38 : index
    %287 = memref.load %arg4[%c38] : memref<64xf32, #tpu.memory_space<smem>>
    %288 = vector.broadcast %287 : f32 to vector<4x4xf32>
    %289 = arith.mulf %288, %106 : vector<4x4xf32>
    %290 = arith.addf %286, %289 : vector<4x4xf32>
    %291 = vector.broadcast %99 : f32 to vector<4x4xf32>
    %292 = arith.addf %290, %291 : vector<4x4xf32>
    %c0_103 = arith.constant 0 : index
    %c8_104 = arith.constant 8 : index
    %c0_105 = arith.constant 0 : index
    %c0_106 = arith.constant 0 : index
    %293 = vector.load %arg8[%c0_103, %c8_104, %c0_105, %c0_106] : memref<1x16x4x4xf32, #tpu.memory_space<vmem>>, vector<1x1x4x4xf32>
    %294 = vector.shape_cast %293 : vector<1x1x4x4xf32> to vector<4x4xf32>
    %295 = vector.shape_cast %292 : vector<4x4xf32> to vector<1x1x4x4xf32>
    tpu.vector_store %arg8[%c0_103, %c8_104, %c0_105, %c0_106], %295 {strides = array<i32>} : memref<1x16x4x4xf32, #tpu.memory_space<vmem>>, vector<1x1x4x4xf32>,
    %c3_107 = arith.constant 3 : index
    %296 = memref.load %arg4[%c3_107] : memref<64xf32, #tpu.memory_space<smem>>
    %297 = vector.broadcast %296 : f32 to vector<4x4xf32>
    %298 = arith.mulf %297, %273 : vector<4x4xf32>
    %c7_108 = arith.constant 7 : index
    %299 = memref.load %arg4[%c7_108] : memref<64xf32, #tpu.memory_space<smem>>
    %300 = vector.broadcast %299 : f32 to vector<4x4xf32>
    %301 = arith.mulf %300, %278 : vector<4x4xf32>
    %302 = arith.addf %298, %301 : vector<4x4xf32>
    %c35 = arith.constant 35 : index
    %303 = memref.load %arg4[%c35] : memref<64xf32, #tpu.memory_space<smem>>
    %304 = vector.broadcast %303 : f32 to vector<4x4xf32>
    %305 = arith.mulf %304, %101 : vector<4x4xf32>
    %306 = arith.addf %302, %305 : vector<4x4xf32>
    %c39 = arith.constant 39 : index
    %307 = memref.load %arg4[%c39] : memref<64xf32, #tpu.memory_space<smem>>
    %308 = vector.broadcast %307 : f32 to vector<4x4xf32>
    %309 = arith.mulf %308, %106 : vector<4x4xf32>
    %310 = arith.addf %306, %309 : vector<4x4xf32>
    %311 = vector.broadcast %99 : f32 to vector<4x4xf32>
    %312 = arith.addf %310, %311 : vector<4x4xf32>
    %c0_109 = arith.constant 0 : index
    %c9_110 = arith.constant 9 : index
    %c0_111 = arith.constant 0 : index
    %c0_112 = arith.constant 0 : index
    %313 = vector.load %arg8[%c0_109, %c9_110, %c0_111, %c0_112] : memref<1x16x4x4xf32, #tpu.memory_space<vmem>>, vector<1x1x4x4xf32>
    %314 = vector.shape_cast %313 : vector<1x1x4x4xf32> to vector<4x4xf32>
    %315 = vector.shape_cast %312 : vector<4x4xf32> to vector<1x1x4x4xf32>
    tpu.vector_store %arg8[%c0_109, %c9_110, %c0_111, %c0_112], %315 {strides = array<i32>} : memref<1x16x4x4xf32, #tpu.memory_space<vmem>>, vector<1x1x4x4xf32>,
    %c0_113 = arith.constant 0 : index
    %c2_114 = arith.constant 2 : index
    %c2_115 = arith.constant 2 : index
    %316 = vector.load %arg2[%c0_113, %c2_114, %c2_115] : memref<1x6x6xf32, #tpu.memory_space<vmem>>, vector<1x4x4xf32>
    %317 = vector.shape_cast %316 : vector<1x4x4xf32> to vector<4x4xf32>
    %c0_116 = arith.constant 0 : index
    %318 = memref.load %arg4[%c0_116] : memref<64xf32, #tpu.memory_space<smem>>
    %319 = vector.broadcast %318 : f32 to vector<4x4xf32>
    %320 = arith.mulf %319, %317 : vector<4x4xf32>
    %c4_117 = arith.constant 4 : index
    %321 = memref.load %arg4[%c4_117] : memref<64xf32, #tpu.memory_space<smem>>
    %322 = vector.broadcast %321 : f32 to vector<4x4xf32>
    %323 = arith.mulf %322, %273 : vector<4x4xf32>
    %324 = arith.addf %320, %323 : vector<4x4xf32>
    %c32 = arith.constant 32 : index
    %325 = memref.load %arg4[%c32] : memref<64xf32, #tpu.memory_space<smem>>
    %326 = vector.broadcast %325 : f32 to vector<4x4xf32>
    %327 = arith.mulf %326, %149 : vector<4x4xf32>
    %328 = arith.addf %324, %327 : vector<4x4xf32>
    %c36 = arith.constant 36 : index
    %329 = memref.load %arg4[%c36] : memref<64xf32, #tpu.memory_space<smem>>
    %330 = vector.broadcast %329 : f32 to vector<4x4xf32>
    %331 = arith.mulf %330, %101 : vector<4x4xf32>
    %332 = arith.addf %328, %331 : vector<4x4xf32>
    %333 = vector.broadcast %99 : f32 to vector<4x4xf32>
    %334 = arith.addf %332, %333 : vector<4x4xf32>
    %c0_118 = arith.constant 0 : index
    %c10_119 = arith.constant 10 : index
    %c0_120 = arith.constant 0 : index
    %c0_121 = arith.constant 0 : index
    %335 = vector.load %arg8[%c0_118, %c10_119, %c0_120, %c0_121] : memref<1x16x4x4xf32, #tpu.memory_space<vmem>>, vector<1x1x4x4xf32>
    %336 = vector.shape_cast %335 : vector<1x1x4x4xf32> to vector<4x4xf32>
    %337 = vector.shape_cast %334 : vector<4x4xf32> to vector<1x1x4x4xf32>
    tpu.vector_store %arg8[%c0_118, %c10_119, %c0_120, %c0_121], %337 {strides = array<i32>} : memref<1x16x4x4xf32, #tpu.memory_space<vmem>>, vector<1x1x4x4xf32>,
    %c1_122 = arith.constant 1 : index
    %338 = memref.load %arg4[%c1_122] : memref<64xf32, #tpu.memory_space<smem>>
    %339 = vector.broadcast %338 : f32 to vector<4x4xf32>
    %340 = arith.mulf %339, %317 : vector<4x4xf32>
    %c5_123 = arith.constant 5 : index
    %341 = memref.load %arg4[%c5_123] : memref<64xf32, #tpu.memory_space<smem>>
    %342 = vector.broadcast %341 : f32 to vector<4x4xf32>
    %343 = arith.mulf %342, %273 : vector<4x4xf32>
    %344 = arith.addf %340, %343 : vector<4x4xf32>
    %c33 = arith.constant 33 : index
    %345 = memref.load %arg4[%c33] : memref<64xf32, #tpu.memory_space<smem>>
    %346 = vector.broadcast %345 : f32 to vector<4x4xf32>
    %347 = arith.mulf %346, %149 : vector<4x4xf32>
    %348 = arith.addf %344, %347 : vector<4x4xf32>
    %c37 = arith.constant 37 : index
    %349 = memref.load %arg4[%c37] : memref<64xf32, #tpu.memory_space<smem>>
    %350 = vector.broadcast %349 : f32 to vector<4x4xf32>
    %351 = arith.mulf %350, %101 : vector<4x4xf32>
    %352 = arith.addf %348, %351 : vector<4x4xf32>
    %353 = vector.broadcast %99 : f32 to vector<4x4xf32>
    %354 = arith.addf %352, %353 : vector<4x4xf32>
    %c0_124 = arith.constant 0 : index
    %c11_125 = arith.constant 11 : index
    %c0_126 = arith.constant 0 : index
    %c0_127 = arith.constant 0 : index
    %355 = vector.load %arg8[%c0_124, %c11_125, %c0_126, %c0_127] : memref<1x16x4x4xf32, #tpu.memory_space<vmem>>, vector<1x1x4x4xf32>
    %356 = vector.shape_cast %355 : vector<1x1x4x4xf32> to vector<4x4xf32>
    %357 = vector.shape_cast %354 : vector<4x4xf32> to vector<1x1x4x4xf32>
    tpu.vector_store %arg8[%c0_124, %c11_125, %c0_126, %c0_127], %357 {strides = array<i32>} : memref<1x16x4x4xf32, #tpu.memory_space<vmem>>, vector<1x1x4x4xf32>,
    %c10_128 = arith.constant 10 : index
    %358 = memref.load %arg4[%c10_128] : memref<64xf32, #tpu.memory_space<smem>>
    %359 = vector.broadcast %358 : f32 to vector<4x4xf32>
    %360 = arith.mulf %359, %273 : vector<4x4xf32>
    %c14_129 = arith.constant 14 : index
    %361 = memref.load %arg4[%c14_129] : memref<64xf32, #tpu.memory_space<smem>>
    %362 = vector.broadcast %361 : f32 to vector<4x4xf32>
    %363 = arith.mulf %362, %278 : vector<4x4xf32>
    %364 = arith.addf %360, %363 : vector<4x4xf32>
    %c42 = arith.constant 42 : index
    %365 = memref.load %arg4[%c42] : memref<64xf32, #tpu.memory_space<smem>>
    %366 = vector.broadcast %365 : f32 to vector<4x4xf32>
    %367 = arith.mulf %366, %101 : vector<4x4xf32>
    %368 = arith.addf %364, %367 : vector<4x4xf32>
    %c46 = arith.constant 46 : index
    %369 = memref.load %arg4[%c46] : memref<64xf32, #tpu.memory_space<smem>>
    %370 = vector.broadcast %369 : f32 to vector<4x4xf32>
    %371 = arith.mulf %370, %106 : vector<4x4xf32>
    %372 = arith.addf %368, %371 : vector<4x4xf32>
    %373 = vector.broadcast %99 : f32 to vector<4x4xf32>
    %374 = arith.addf %372, %373 : vector<4x4xf32>
    %c0_130 = arith.constant 0 : index
    %c12_131 = arith.constant 12 : index
    %c0_132 = arith.constant 0 : index
    %c0_133 = arith.constant 0 : index
    %375 = vector.load %arg8[%c0_130, %c12_131, %c0_132, %c0_133] : memref<1x16x4x4xf32, #tpu.memory_space<vmem>>, vector<1x1x4x4xf32>
    %376 = vector.shape_cast %375 : vector<1x1x4x4xf32> to vector<4x4xf32>
    %377 = vector.shape_cast %374 : vector<4x4xf32> to vector<1x1x4x4xf32>
    tpu.vector_store %arg8[%c0_130, %c12_131, %c0_132, %c0_133], %377 {strides = array<i32>} : memref<1x16x4x4xf32, #tpu.memory_space<vmem>>, vector<1x1x4x4xf32>,
    %c11_134 = arith.constant 11 : index
    %378 = memref.load %arg4[%c11_134] : memref<64xf32, #tpu.memory_space<smem>>
    %379 = vector.broadcast %378 : f32 to vector<4x4xf32>
    %380 = arith.mulf %379, %273 : vector<4x4xf32>
    %c15_135 = arith.constant 15 : index
    %381 = memref.load %arg4[%c15_135] : memref<64xf32, #tpu.memory_space<smem>>
    %382 = vector.broadcast %381 : f32 to vector<4x4xf32>
    %383 = arith.mulf %382, %278 : vector<4x4xf32>
    %384 = arith.addf %380, %383 : vector<4x4xf32>
    %c43 = arith.constant 43 : index
    %385 = memref.load %arg4[%c43] : memref<64xf32, #tpu.memory_space<smem>>
    %386 = vector.broadcast %385 : f32 to vector<4x4xf32>
    %387 = arith.mulf %386, %101 : vector<4x4xf32>
    %388 = arith.addf %384, %387 : vector<4x4xf32>
    %c47 = arith.constant 47 : index
    %389 = memref.load %arg4[%c47] : memref<64xf32, #tpu.memory_space<smem>>
    %390 = vector.broadcast %389 : f32 to vector<4x4xf32>
    %391 = arith.mulf %390, %106 : vector<4x4xf32>
    %392 = arith.addf %388, %391 : vector<4x4xf32>
    %393 = vector.broadcast %99 : f32 to vector<4x4xf32>
    %394 = arith.addf %392, %393 : vector<4x4xf32>
    %c0_136 = arith.constant 0 : index
    %c13_137 = arith.constant 13 : index
    %c0_138 = arith.constant 0 : index
    %c0_139 = arith.constant 0 : index
    %395 = vector.load %arg8[%c0_136, %c13_137, %c0_138, %c0_139] : memref<1x16x4x4xf32, #tpu.memory_space<vmem>>, vector<1x1x4x4xf32>
    %396 = vector.shape_cast %395 : vector<1x1x4x4xf32> to vector<4x4xf32>
    %397 = vector.shape_cast %394 : vector<4x4xf32> to vector<1x1x4x4xf32>
    tpu.vector_store %arg8[%c0_136, %c13_137, %c0_138, %c0_139], %397 {strides = array<i32>} : memref<1x16x4x4xf32, #tpu.memory_space<vmem>>, vector<1x1x4x4xf32>,
    %c8_140 = arith.constant 8 : index
    %398 = memref.load %arg4[%c8_140] : memref<64xf32, #tpu.memory_space<smem>>
    %399 = vector.broadcast %398 : f32 to vector<4x4xf32>
    %400 = arith.mulf %399, %317 : vector<4x4xf32>
    %c12_141 = arith.constant 12 : index
    %401 = memref.load %arg4[%c12_141] : memref<64xf32, #tpu.memory_space<smem>>
    %402 = vector.broadcast %401 : f32 to vector<4x4xf32>
    %403 = arith.mulf %402, %273 : vector<4x4xf32>
    %404 = arith.addf %400, %403 : vector<4x4xf32>
    %c40 = arith.constant 40 : index
    %405 = memref.load %arg4[%c40] : memref<64xf32, #tpu.memory_space<smem>>
    %406 = vector.broadcast %405 : f32 to vector<4x4xf32>
    %407 = arith.mulf %406, %149 : vector<4x4xf32>
    %408 = arith.addf %404, %407 : vector<4x4xf32>
    %c44 = arith.constant 44 : index
    %409 = memref.load %arg4[%c44] : memref<64xf32, #tpu.memory_space<smem>>
    %410 = vector.broadcast %409 : f32 to vector<4x4xf32>
    %411 = arith.mulf %410, %101 : vector<4x4xf32>
    %412 = arith.addf %408, %411 : vector<4x4xf32>
    %413 = vector.broadcast %99 : f32 to vector<4x4xf32>
    %414 = arith.addf %412, %413 : vector<4x4xf32>
    %c0_142 = arith.constant 0 : index
    %c14_143 = arith.constant 14 : index
    %c0_144 = arith.constant 0 : index
    %c0_145 = arith.constant 0 : index
    %415 = vector.load %arg8[%c0_142, %c14_143, %c0_144, %c0_145] : memref<1x16x4x4xf32, #tpu.memory_space<vmem>>, vector<1x1x4x4xf32>
    %416 = vector.shape_cast %415 : vector<1x1x4x4xf32> to vector<4x4xf32>
    %417 = vector.shape_cast %414 : vector<4x4xf32> to vector<1x1x4x4xf32>
    tpu.vector_store %arg8[%c0_142, %c14_143, %c0_144, %c0_145], %417 {strides = array<i32>} : memref<1x16x4x4xf32, #tpu.memory_space<vmem>>, vector<1x1x4x4xf32>,
    %c9_146 = arith.constant 9 : index
    %418 = memref.load %arg4[%c9_146] : memref<64xf32, #tpu.memory_space<smem>>
    %419 = vector.broadcast %418 : f32 to vector<4x4xf32>
    %420 = arith.mulf %419, %317 : vector<4x4xf32>
    %c13_147 = arith.constant 13 : index
    %421 = memref.load %arg4[%c13_147] : memref<64xf32, #tpu.memory_space<smem>>
    %422 = vector.broadcast %421 : f32 to vector<4x4xf32>
    %423 = arith.mulf %422, %273 : vector<4x4xf32>
    %424 = arith.addf %420, %423 : vector<4x4xf32>
    %c41 = arith.constant 41 : index
    %425 = memref.load %arg4[%c41] : memref<64xf32, #tpu.memory_space<smem>>
    %426 = vector.broadcast %425 : f32 to vector<4x4xf32>
    %427 = arith.mulf %426, %149 : vector<4x4xf32>
    %428 = arith.addf %424, %427 : vector<4x4xf32>
    %c45 = arith.constant 45 : index
    %429 = memref.load %arg4[%c45] : memref<64xf32, #tpu.memory_space<smem>>
    %430 = vector.broadcast %429 : f32 to vector<4x4xf32>
    %431 = arith.mulf %430, %101 : vector<4x4xf32>
    %432 = arith.addf %428, %431 : vector<4x4xf32>
    %433 = vector.broadcast %99 : f32 to vector<4x4xf32>
    %434 = arith.addf %432, %433 : vector<4x4xf32>
    %c0_148 = arith.constant 0 : index
    %c15_149 = arith.constant 15 : index
    %c0_150 = arith.constant 0 : index
    %c0_151 = arith.constant 0 : index
    %435 = vector.load %arg8[%c0_148, %c15_149, %c0_150, %c0_151] : memref<1x16x4x4xf32, #tpu.memory_space<vmem>>, vector<1x1x4x4xf32>
    %436 = vector.shape_cast %435 : vector<1x1x4x4xf32> to vector<4x4xf32>
    %437 = vector.shape_cast %434 : vector<4x4xf32> to vector<1x1x4x4xf32>
    tpu.vector_store %arg8[%c0_148, %c15_149, %c0_150, %c0_151], %437 {strides = array<i32>} : memref<1x16x4x4xf32, #tpu.memory_space<vmem>>, vector<1x1x4x4xf32>,
    return
  }
  func.func @transform_0(%arg0: i32) -> (i32, i32, i32) {
    %c0_i32 = arith.constant 0 : i32
    %c0_i32_0 = arith.constant 0 : i32
    %c0_i32_1 = arith.constant 0 : i32
    return %arg0, %c0_i32, %c0_i32_0 : i32, i32, i32
  }
  func.func @transform_1(%arg0: i32) -> (i32, i32, i32) {
    %c0_i32 = arith.constant 0 : i32
    %c0_i32_0 = arith.constant 0 : i32
    %c0_i32_1 = arith.constant 0 : i32
    return %arg0, %c0_i32, %c0_i32_0 : i32, i32, i32
  }
  func.func @transform_2(%arg0: i32) -> i32 {
    %c0_i32 = arith.constant 0 : i32
    %c0_i32_0 = arith.constant 0 : i32
    return %c0_i32 : i32
  }
  func.func @transform_3(%arg0: i32) -> i32 {
    %c0_i32 = arith.constant 0 : i32
    %c0_i32_0 = arith.constant 0 : i32
    return %c0_i32 : i32
  }
  func.func @transform_4(%arg0: i32) -> i32 {
    %c0_i32 = arith.constant 0 : i32
    %c0_i32_0 = arith.constant 0 : i32
    return %c0_i32 : i32
  }
  func.func @transform_5(%arg0: i32) -> i32 {
    %c0_i32 = arith.constant 0 : i32
    %c0_i32_0 = arith.constant 0 : i32
    return %c0_i32 : i32
  }
  func.func @transform_6(%arg0: i32) -> (i32, i32, i32, i32) {
    %c0_i32 = arith.constant 0 : i32
    %c0_i32_0 = arith.constant 0 : i32
    %c0_i32_1 = arith.constant 0 : i32
    %c0_i32_2 = arith.constant 0 : i32
    return %arg0, %c0_i32, %c0_i32_0, %c0_i32_1 : i32, i32, i32, i32
  }
  func.func @transform_7(%arg0: i32) -> (i32, i32, i32, i32) {
    %c0_i32 = arith.constant 0 : i32
    %c0_i32_0 = arith.constant 0 : i32
    %c0_i32_1 = arith.constant 0 : i32
    %c0_i32_2 = arith.constant 0 : i32
    return %arg0, %c0_i32, %c0_i32_0, %c0_i32_1 : i32, i32, i32, i32
  }
}

module attributes {stable_mosaic.version = 11 : i64} {
  func.func @kernel(%arg0: i32, %arg1: memref<1x16x16xf32, #tpu.memory_space<vmem>>, %arg2: memref<1x16x16xf32, #tpu.memory_space<vmem>>, %arg3: memref<1x16x16xf32, #tpu.memory_space<vmem>>, %arg4: memref<3xf32, #tpu.memory_space<smem>>, %arg5: memref<1xf32, #tpu.memory_space<smem>>, %arg6: memref<16xf32, #tpu.memory_space<smem>>, %arg7: memref<1xf32, #tpu.memory_space<smem>>, %arg8: memref<1x4x16x16xf32, #tpu.memory_space<vmem>>, %arg9: memref<24x128xf32, #tpu.memory_space<vmem>>) attributes {dimension_semantics = [#tpu.dimension_semantics<parallel>], iteration_bounds = array<i64: 2>, scalar_prefetch = 0 : i64, scratch_operands = 1 : i64, tpu.core_type = #tpu.core_type<tc>, window_params = [{transform_indices = @transform_0, window_bounds = array<i64: 1, 16, 16>}, {transform_indices = @transform_1, window_bounds = array<i64: 1, 16, 16>}, {transform_indices = @transform_2, window_bounds = array<i64: 1, 16, 16>}, {transform_indices = @transform_3, window_bounds = array<i64: 3>}, {transform_indices = @transform_4, window_bounds = array<i64: 1>}, {transform_indices = @transform_5, window_bounds = array<i64: 16>}, {transform_indices = @transform_6, window_bounds = array<i64: 1>}, {transform_indices = @transform_7, window_bounds = array<i64: 1, 4, 16, 16>}]} {
    %c0 = arith.constant 0 : index
    %0 = memref.load %arg5[%c0] : memref<1xf32, #tpu.memory_space<smem>>
    %c0_0 = arith.constant 0 : index
    %1 = memref.load %arg4[%c0_0] : memref<3xf32, #tpu.memory_space<smem>>
    %c0_1 = arith.constant 0 : index
    %c0_2 = arith.constant 0 : index
    %c0_3 = arith.constant 0 : index
    %2 = vector.load %arg1[%c0_1, %c0_2, %c0_3] : memref<1x16x16xf32, #tpu.memory_space<vmem>>, vector<1x16x16xf32>
    %3 = vector.shape_cast %2 : vector<1x16x16xf32> to vector<16x16xf32>
    %4 = vector.broadcast %1 : f32 to vector<16x16xf32>
    %5 = arith.mulf %4, %3 : vector<16x16xf32>
    %6 = vector.broadcast %0 : f32 to vector<16x16xf32>
    %7 = arith.addf %6, %5 : vector<16x16xf32>
    %c1 = arith.constant 1 : index
    %8 = memref.load %arg4[%c1] : memref<3xf32, #tpu.memory_space<smem>>
    %c0_4 = arith.constant 0 : index
    %c0_5 = arith.constant 0 : index
    %c0_6 = arith.constant 0 : index
    %9 = vector.load %arg2[%c0_4, %c0_5, %c0_6] : memref<1x16x16xf32, #tpu.memory_space<vmem>>, vector<1x16x16xf32>
    %10 = vector.shape_cast %9 : vector<1x16x16xf32> to vector<16x16xf32>
    %11 = vector.broadcast %8 : f32 to vector<16x16xf32>
    %12 = arith.mulf %11, %10 : vector<16x16xf32>
    %13 = arith.addf %7, %12 : vector<16x16xf32>
    %c2 = arith.constant 2 : index
    %14 = memref.load %arg4[%c2] : memref<3xf32, #tpu.memory_space<smem>>
    %c0_7 = arith.constant 0 : index
    %c0_8 = arith.constant 0 : index
    %c0_9 = arith.constant 0 : index
    %15 = vector.load %arg3[%c0_7, %c0_8, %c0_9] : memref<1x16x16xf32, #tpu.memory_space<vmem>>, vector<1x16x16xf32>
    %16 = vector.shape_cast %15 : vector<1x16x16xf32> to vector<16x16xf32>
    %17 = vector.broadcast %14 : f32 to vector<16x16xf32>
    %18 = arith.mulf %17, %16 : vector<16x16xf32>
    %19 = arith.addf %13, %18 : vector<16x16xf32>
    %cst = arith.constant 0.000000e+00 : f32
    %20 = vector.broadcast %cst : f32 to vector<24x128xf32>
    %c0_10 = arith.constant 0 : index
    %c0_11 = arith.constant 0 : index
    %21 = vector.load %arg9[%c0_10, %c0_11] : memref<24x128xf32, #tpu.memory_space<vmem>>, vector<24x128xf32>
    tpu.vector_store %arg9[%c0_10, %c0_11], %20 {strides = array<i32>} : memref<24x128xf32, #tpu.memory_space<vmem>>, vector<24x128xf32>,
    %c1_12 = arith.constant 1 : index
    %c1_13 = arith.constant 1 : index
    %22 = vector.load %arg9[%c1_12, %c1_13] : memref<24x128xf32, #tpu.memory_space<vmem>>, vector<16x16xf32>
    tpu.vector_store %arg9[%c1_12, %c1_13], %19 {strides = array<i32>} : memref<24x128xf32, #tpu.memory_space<vmem>>, vector<16x16xf32>,
    %c1_14 = arith.constant 1 : index
    %c1_15 = arith.constant 1 : index
    %23 = vector.load %arg9[%c1_14, %c1_15] : memref<24x128xf32, #tpu.memory_space<vmem>>, vector<16x16xf32>
    %c5 = arith.constant 5 : index
    %24 = memref.load %arg6[%c5] : memref<16xf32, #tpu.memory_space<smem>>
    %25 = vector.broadcast %24 : f32 to vector<16x16xf32>
    %26 = arith.mulf %25, %23 : vector<16x16xf32>
    %c1_16 = arith.constant 1 : index
    %c0_17 = arith.constant 0 : index
    %27 = vector.load %arg9[%c1_16, %c0_17] : memref<24x128xf32, #tpu.memory_space<vmem>>, vector<16x16xf32>
    %c7 = arith.constant 7 : index
    %28 = memref.load %arg6[%c7] : memref<16xf32, #tpu.memory_space<smem>>
    %29 = vector.broadcast %28 : f32 to vector<16x16xf32>
    %30 = arith.mulf %29, %27 : vector<16x16xf32>
    %31 = arith.addf %26, %30 : vector<16x16xf32>
    %c0_18 = arith.constant 0 : index
    %c1_19 = arith.constant 1 : index
    %32 = vector.load %arg9[%c0_18, %c1_19] : memref<24x128xf32, #tpu.memory_space<vmem>>, vector<16x16xf32>
    %c13 = arith.constant 13 : index
    %33 = memref.load %arg6[%c13] : memref<16xf32, #tpu.memory_space<smem>>
    %34 = vector.broadcast %33 : f32 to vector<16x16xf32>
    %35 = arith.mulf %34, %32 : vector<16x16xf32>
    %36 = arith.addf %31, %35 : vector<16x16xf32>
    %c0_20 = arith.constant 0 : index
    %c0_21 = arith.constant 0 : index
    %37 = vector.load %arg9[%c0_20, %c0_21] : memref<24x128xf32, #tpu.memory_space<vmem>>, vector<16x16xf32>
    %c15 = arith.constant 15 : index
    %38 = memref.load %arg6[%c15] : memref<16xf32, #tpu.memory_space<smem>>
    %39 = vector.broadcast %38 : f32 to vector<16x16xf32>
    %40 = arith.mulf %39, %37 : vector<16x16xf32>
    %41 = arith.addf %36, %40 : vector<16x16xf32>
    %c0_22 = arith.constant 0 : index
    %42 = memref.load %arg7[%c0_22] : memref<1xf32, #tpu.memory_space<smem>>
    %43 = vector.broadcast %42 : f32 to vector<16x16xf32>
    %44 = arith.addf %41, %43 : vector<16x16xf32>
    %c0_23 = arith.constant 0 : index
    %c0_24 = arith.constant 0 : index
    %c0_25 = arith.constant 0 : index
    %c0_26 = arith.constant 0 : index
    %45 = vector.load %arg8[%c0_23, %c0_24, %c0_25, %c0_26] : memref<1x4x16x16xf32, #tpu.memory_space<vmem>>, vector<1x1x16x16xf32>
    %46 = vector.shape_cast %45 : vector<1x1x16x16xf32> to vector<16x16xf32>
    %47 = vector.shape_cast %44 : vector<16x16xf32> to vector<1x1x16x16xf32>
    tpu.vector_store %arg8[%c0_23, %c0_24, %c0_25, %c0_26], %47 {strides = array<i32>} : memref<1x4x16x16xf32, #tpu.memory_space<vmem>>, vector<1x1x16x16xf32>,
    %c1_27 = arith.constant 1 : index
    %c2_28 = arith.constant 2 : index
    %48 = vector.load %arg9[%c1_27, %c2_28] : memref<24x128xf32, #tpu.memory_space<vmem>>, vector<16x16xf32>
    %c4 = arith.constant 4 : index
    %49 = memref.load %arg6[%c4] : memref<16xf32, #tpu.memory_space<smem>>
    %50 = vector.broadcast %49 : f32 to vector<16x16xf32>
    %51 = arith.mulf %50, %48 : vector<16x16xf32>
    %c6 = arith.constant 6 : index
    %52 = memref.load %arg6[%c6] : memref<16xf32, #tpu.memory_space<smem>>
    %53 = vector.broadcast %52 : f32 to vector<16x16xf32>
    %54 = arith.mulf %53, %23 : vector<16x16xf32>
    %55 = arith.addf %51, %54 : vector<16x16xf32>
    %c0_29 = arith.constant 0 : index
    %c2_30 = arith.constant 2 : index
    %56 = vector.load %arg9[%c0_29, %c2_30] : memref<24x128xf32, #tpu.memory_space<vmem>>, vector<16x16xf32>
    %c12 = arith.constant 12 : index
    %57 = memref.load %arg6[%c12] : memref<16xf32, #tpu.memory_space<smem>>
    %58 = vector.broadcast %57 : f32 to vector<16x16xf32>
    %59 = arith.mulf %58, %56 : vector<16x16xf32>
    %60 = arith.addf %55, %59 : vector<16x16xf32>
    %c14 = arith.constant 14 : index
    %61 = memref.load %arg6[%c14] : memref<16xf32, #tpu.memory_space<smem>>
    %62 = vector.broadcast %61 : f32 to vector<16x16xf32>
    %63 = arith.mulf %62, %32 : vector<16x16xf32>
    %64 = arith.addf %60, %63 : vector<16x16xf32>
    %c0_31 = arith.constant 0 : index
    %65 = memref.load %arg7[%c0_31] : memref<1xf32, #tpu.memory_space<smem>>
    %66 = vector.broadcast %65 : f32 to vector<16x16xf32>
    %67 = arith.addf %64, %66 : vector<16x16xf32>
    %c0_32 = arith.constant 0 : index
    %c1_33 = arith.constant 1 : index
    %c0_34 = arith.constant 0 : index
    %c0_35 = arith.constant 0 : index
    %68 = vector.load %arg8[%c0_32, %c1_33, %c0_34, %c0_35] : memref<1x4x16x16xf32, #tpu.memory_space<vmem>>, vector<1x1x16x16xf32>
    %69 = vector.shape_cast %68 : vector<1x1x16x16xf32> to vector<16x16xf32>
    %70 = vector.shape_cast %67 : vector<16x16xf32> to vector<1x1x16x16xf32>
    tpu.vector_store %arg8[%c0_32, %c1_33, %c0_34, %c0_35], %70 {strides = array<i32>} : memref<1x4x16x16xf32, #tpu.memory_space<vmem>>, vector<1x1x16x16xf32>,
    %c2_36 = arith.constant 2 : index
    %c1_37 = arith.constant 1 : index
    %71 = vector.load %arg9[%c2_36, %c1_37] : memref<24x128xf32, #tpu.memory_space<vmem>>, vector<16x16xf32>
    %c1_38 = arith.constant 1 : index
    %72 = memref.load %arg6[%c1_38] : memref<16xf32, #tpu.memory_space<smem>>
    %73 = vector.broadcast %72 : f32 to vector<16x16xf32>
    %74 = arith.mulf %73, %71 : vector<16x16xf32>
    %c2_39 = arith.constant 2 : index
    %c0_40 = arith.constant 0 : index
    %75 = vector.load %arg9[%c2_39, %c0_40] : memref<24x128xf32, #tpu.memory_space<vmem>>, vector<16x16xf32>
    %c3 = arith.constant 3 : index
    %76 = memref.load %arg6[%c3] : memref<16xf32, #tpu.memory_space<smem>>
    %77 = vector.broadcast %76 : f32 to vector<16x16xf32>
    %78 = arith.mulf %77, %75 : vector<16x16xf32>
    %79 = arith.addf %74, %78 : vector<16x16xf32>
    %c9 = arith.constant 9 : index
    %80 = memref.load %arg6[%c9] : memref<16xf32, #tpu.memory_space<smem>>
    %81 = vector.broadcast %80 : f32 to vector<16x16xf32>
    %82 = arith.mulf %81, %23 : vector<16x16xf32>
    %83 = arith.addf %79, %82 : vector<16x16xf32>
    %c11 = arith.constant 11 : index
    %84 = memref.load %arg6[%c11] : memref<16xf32, #tpu.memory_space<smem>>
    %85 = vector.broadcast %84 : f32 to vector<16x16xf32>
    %86 = arith.mulf %85, %27 : vector<16x16xf32>
    %87 = arith.addf %83, %86 : vector<16x16xf32>
    %c0_41 = arith.constant 0 : index
    %88 = memref.load %arg7[%c0_41] : memref<1xf32, #tpu.memory_space<smem>>
    %89 = vector.broadcast %88 : f32 to vector<16x16xf32>
    %90 = arith.addf %87, %89 : vector<16x16xf32>
    %c0_42 = arith.constant 0 : index
    %c2_43 = arith.constant 2 : index
    %c0_44 = arith.constant 0 : index
    %c0_45 = arith.constant 0 : index
    %91 = vector.load %arg8[%c0_42, %c2_43, %c0_44, %c0_45] : memref<1x4x16x16xf32, #tpu.memory_space<vmem>>, vector<1x1x16x16xf32>
    %92 = vector.shape_cast %91 : vector<1x1x16x16xf32> to vector<16x16xf32>
    %93 = vector.shape_cast %90 : vector<16x16xf32> to vector<1x1x16x16xf32>
    tpu.vector_store %arg8[%c0_42, %c2_43, %c0_44, %c0_45], %93 {strides = array<i32>} : memref<1x4x16x16xf32, #tpu.memory_space<vmem>>, vector<1x1x16x16xf32>,
    %c2_46 = arith.constant 2 : index
    %c2_47 = arith.constant 2 : index
    %94 = vector.load %arg9[%c2_46, %c2_47] : memref<24x128xf32, #tpu.memory_space<vmem>>, vector<16x16xf32>
    %c0_48 = arith.constant 0 : index
    %95 = memref.load %arg6[%c0_48] : memref<16xf32, #tpu.memory_space<smem>>
    %96 = vector.broadcast %95 : f32 to vector<16x16xf32>
    %97 = arith.mulf %96, %94 : vector<16x16xf32>
    %c2_49 = arith.constant 2 : index
    %98 = memref.load %arg6[%c2_49] : memref<16xf32, #tpu.memory_space<smem>>
    %99 = vector.broadcast %98 : f32 to vector<16x16xf32>
    %100 = arith.mulf %99, %71 : vector<16x16xf32>
    %101 = arith.addf %97, %100 : vector<16x16xf32>
    %c8 = arith.constant 8 : index
    %102 = memref.load %arg6[%c8] : memref<16xf32, #tpu.memory_space<smem>>
    %103 = vector.broadcast %102 : f32 to vector<16x16xf32>
    %104 = arith.mulf %103, %48 : vector<16x16xf32>
    %105 = arith.addf %101, %104 : vector<16x16xf32>
    %c10 = arith.constant 10 : index
    %106 = memref.load %arg6[%c10] : memref<16xf32, #tpu.memory_space<smem>>
    %107 = vector.broadcast %106 : f32 to vector<16x16xf32>
    %108 = arith.mulf %107, %23 : vector<16x16xf32>
    %109 = arith.addf %105, %108 : vector<16x16xf32>
    %c0_50 = arith.constant 0 : index
    %110 = memref.load %arg7[%c0_50] : memref<1xf32, #tpu.memory_space<smem>>
    %111 = vector.broadcast %110 : f32 to vector<16x16xf32>
    %112 = arith.addf %109, %111 : vector<16x16xf32>
    %c0_51 = arith.constant 0 : index
    %c3_52 = arith.constant 3 : index
    %c0_53 = arith.constant 0 : index
    %c0_54 = arith.constant 0 : index
    %113 = vector.load %arg8[%c0_51, %c3_52, %c0_53, %c0_54] : memref<1x4x16x16xf32, #tpu.memory_space<vmem>>, vector<1x1x16x16xf32>
    %114 = vector.shape_cast %113 : vector<1x1x16x16xf32> to vector<16x16xf32>
    %115 = vector.shape_cast %112 : vector<16x16xf32> to vector<1x1x16x16xf32>
    tpu.vector_store %arg8[%c0_51, %c3_52, %c0_53, %c0_54], %115 {strides = array<i32>} : memref<1x4x16x16xf32, #tpu.memory_space<vmem>>, vector<1x1x16x16xf32>,
    return
  }
  func.func @transform_0(%arg0: i32) -> (i32, i32, i32) {
    %c0_i32 = arith.constant 0 : i32
    %c0_i32_0 = arith.constant 0 : i32
    %c0_i32_1 = arith.constant 0 : i32
    return %arg0, %c0_i32, %c0_i32_0 : i32, i32, i32
  }
  func.func @transform_1(%arg0: i32) -> (i32, i32, i32) {
    %c0_i32 = arith.constant 0 : i32
    %c0_i32_0 = arith.constant 0 : i32
    %c0_i32_1 = arith.constant 0 : i32
    return %arg0, %c0_i32, %c0_i32_0 : i32, i32, i32
  }
  func.func @transform_2(%arg0: i32) -> (i32, i32, i32) {
    %c0_i32 = arith.constant 0 : i32
    %c0_i32_0 = arith.constant 0 : i32
    %c0_i32_1 = arith.constant 0 : i32
    return %arg0, %c0_i32, %c0_i32_0 : i32, i32, i32
  }
  func.func @transform_3(%arg0: i32) -> i32 {
    %c0_i32 = arith.constant 0 : i32
    %c0_i32_0 = arith.constant 0 : i32
    return %c0_i32 : i32
  }
  func.func @transform_4(%arg0: i32) -> i32 {
    %c0_i32 = arith.constant 0 : i32
    %c0_i32_0 = arith.constant 0 : i32
    return %c0_i32 : i32
  }
  func.func @transform_5(%arg0: i32) -> i32 {
    %c0_i32 = arith.constant 0 : i32
    %c0_i32_0 = arith.constant 0 : i32
    return %c0_i32 : i32
  }
  func.func @transform_6(%arg0: i32) -> i32 {
    %c0_i32 = arith.constant 0 : i32
    %c0_i32_0 = arith.constant 0 : i32
    return %c0_i32 : i32
  }
  func.func @transform_7(%arg0: i32) -> (i32, i32, i32, i32) {
    %c0_i32 = arith.constant 0 : i32
    %c0_i32_0 = arith.constant 0 : i32
    %c0_i32_1 = arith.constant 0 : i32
    %c0_i32_2 = arith.constant 0 : i32
    return %arg0, %c0_i32, %c0_i32_0, %c0_i32_1 : i32, i32, i32, i32
  }
}

</mosaic_0001>

<llo_original>
// kernel: _lambda_.3
$region0: #{_lambda_.3}
  #allocation0 [shape = 'u32[]', space=smem, size = 0x4, offset = 0x4, fixed_abs, tag = 'smem constant byte address 0x4 - core index']
  #allocation1 [shape = 'u32[72,128]{1,0:T(1,128)}', space=vmem, size = 0x9000, scoped, tag = 'internal scratch']
  #allocation2 [shape = 'f32[24,128]{1,0:T(8,128)}', space=vmem, size = 0x3000, scoped, tag = 'scratch operand']
  #allocation3 [shape = 'f32[1]{0:T(128)S(6)}', space=smem, size = 0x200, scoped, tag = 'scoped memory for _lambda_.3']
  #allocation4 [shape = 'f32[1]{0:T(128)S(6)}', space=smem, size = 0x200, scoped, tag = 'scoped memory for _lambda_.3']
  %s0 = inlined_call_operand.vmem [shape: f32[2,16,16], index: 0, kind: input, shape index: {}]
  %s1 = inlined_call_operand.vmem [shape: f32[2,16,16], index: 1, kind: input, shape index: {}]
  %s2 = inlined_call_operand.vmem [shape: f32[2,16,16], index: 2, kind: input, shape index: {}]
  %s3 = inlined_call_operand.vmem [shape: f32[3], index: 3, kind: input, shape index: {}]
  %s4 = inlined_call_operand.<no memory space> [shape: f32[1], index: 4, kind: input, shape index: {}]
  %s5 = inlined_call_operand.vmem [shape: f32[16], index: 5, kind: input, shape index: {}]
  %s6 = inlined_call_operand.<no memory space> [shape: f32[1], index: 6, kind: input, shape index: {}]
  %s7 = inlined_call_operand.vmem [shape: f32[2,4,16,16], index: 7, kind: output, shape index: {}]
  %s8 = sld [smem:[#allocation0]]
  $region69: #{_lambda_.3} parent=0
    _
  %s10 = ssub.s32 1, %s8
  %s11 = scalar_select 0, %s10, %s8
  %12 = sst [smem:[#allocation3]] %s4
  %13 = sst [smem:[#allocation4]] %s6
  $region1: #{_lambda_.3} parent=0
    #allocation5 [shape = 'u8[512]{0}', space=smem, size = 0x200, scoped, tag = 'input window, operand 3, single buffered']
    #allocation6 [shape = 's32[2]{0}', space=sflag, size = 0x8, scoped, tag = 'scoped memory for _lambda_.3']
    #allocation7 [shape = 'u8[512]{0}', space=smem, size = 0x200, scoped, tag = 'input window, operand 5, single buffered']
    #allocation8 [shape = 's32[1]{0}', space=sflag, size = 0x4, scoped, tag = 'scoped memory for _lambda_.3']
    %14 = vsyncpa [#allocation6], 0
    %15 = vsyncpa [#allocation8], 0
    loop: start=0, step=1, limit=4
    $region2: #{_lambda_.3} parent=1 // loop_pre_header
      _
    $region3: #{_lambda_.3} parent=1 // loop_header
      %s17 = sphi 0, %s21
      %p18 = scmp.ge.s32.totalorder %s17, 4
      %s27 = sphi 0, %s29
      %s30 = sphi 0, %s27
      %s31 = sphi 0, %s30
      %s47 = sphi 0, %s31
      %s53 = sphi 0, %s55
      %s56 = sphi 0, %s53
      %s57 = sphi 0, %s56
      %s73 = sphi 0, %s57
      %s79 = sphi 0, %s81
      %s82 = sphi 0, %s79
      %s83 = sphi 0, %s82
      %s99 = sphi 0, %s83
      %s103 = sphi 0, %s103
      %s105 = sphi 0, %s103
      %s106 = sphi 0, %s105
      %s120 = sphi 0, %s106
      %s124 = sphi 0, %s124
      %s126 = sphi 0, %s124
      %s127 = sphi 0, %s126
      %s141 = sphi 0, %s127
      %s145 = sphi 0, %s145
      %s147 = sphi 0, %s145
      %s148 = sphi 0, %s147
      %s162 = sphi 0, %s148
      %s166 = sphi 0, %s166
      %s168 = sphi 0, %s166
      %s169 = sphi 0, %s168
      %s183 = sphi 0, %s169
      %s189 = sphi 0, %s191
      %s192 = sphi 0, %s189
      %s193 = sphi 0, %s192
      %s209 = sphi 0, %s193
    $region4: #{_lambda_.3} parent=1 // loop_header_branch
      %20 = sbr.rel (%p18) target = $region8
    $region5: #{_lambda_.3} parent=1 // loop_body
      %s22 = ssub.s32 %s17, 1
      %s23 = ssub.s32 %s17, 2
      %s24 = sadd.s32 %s17, 1
      %s25 = ssub.s32 %s17, %s24
      %p26 = scmp.eq.s32.totalorder %s25, 0
      %s28 = sadd.s32 %s27, 1
      %s29 = scalar_select %p26, %s27, %s28
      %p32 = pneg %p26
      %p33 = scmp.eq.s32.totalorder %s17, 1
      %p34 = por %p32, %p33
      %p35 = scmp.ne.s32.totalorder %s27, %s30
      %p36 = scmp.eq.s32.totalorder %s17, 0
      %p37 = por %p35, %p36
      %p38 = scmp.ne.s32.totalorder %s27, %s30
      %p39 = scmp.eq.s32.totalorder %s22, 1
      %p40 = por %p38, %p39
      %p41 = scmp.ne.s32.totalorder %s30, %s31
      %p42 = scmp.eq.s32.totalorder %s22, 0
      %p43 = por %p41, %p42
      %p44 = scmp.ne.s32.totalorder %s30, %s31
      %p45 = scmp.eq.s32.totalorder %s23, 1
      %p46 = por %p44, %p45
      %p48 = scmp.ne.s32.totalorder %s31, %s47
      %p49 = scmp.eq.s32.totalorder %s23, 0
      %p50 = por %p48, %p49
      %s51 = ssub.s32 %s17, %s24
      %p52 = scmp.eq.s32.totalorder %s51, 0
      %s54 = sadd.s32 %s53, 1
      %s55 = scalar_select %p52, %s53, %s54
      %p58 = pneg %p52
      %p59 = scmp.eq.s32.totalorder %s17, 1
      %p60 = por %p58, %p59
      %p61 = scmp.ne.s32.totalorder %s53, %s56
      %p62 = scmp.eq.s32.totalorder %s17, 0
      %p63 = por %p61, %p62
      %p64 = scmp.ne.s32.totalorder %s53, %s56
      %p65 = scmp.eq.s32.totalorder %s22, 1
      %p66 = por %p64, %p65
      %p67 = scmp.ne.s32.totalorder %s56, %s57
      %p68 = scmp.eq.s32.totalorder %s22, 0
      %p69 = por %p67, %p68
      %p70 = scmp.ne.s32.totalorder %s56, %s57
      %p71 = scmp.eq.s32.totalorder %s23, 1
      %p72 = por %p70, %p71
      %p74 = scmp.ne.s32.totalorder %s57, %s73
      %p75 = scmp.eq.s32.totalorder %s23, 0
      %p76 = por %p74, %p75
      %s77 = ssub.s32 %s17, %s24
      %p78 = scmp.eq.s32.totalorder %s77, 0
      %s80 = sadd.s32 %s79, 1
      %s81 = scalar_select %p78, %s79, %s80
      %p84 = pneg %p78
      %p85 = scmp.eq.s32.totalorder %s17, 1
      %p86 = por %p84, %p85
      %p87 = scmp.ne.s32.totalorder %s79, %s82
      %p88 = scmp.eq.s32.totalorder %s17, 0
      %p89 = por %p87, %p88
      %p90 = scmp.ne.s32.totalorder %s79, %s82
      %p91 = scmp.eq.s32.totalorder %s22, 1
      %p92 = por %p90, %p91
      %p93 = scmp.ne.s32.totalorder %s82, %s83
      %p94 = scmp.eq.s32.totalorder %s22, 0
      %p95 = por %p93, %p94
      %p96 = scmp.ne.s32.totalorder %s82, %s83
      %p97 = scmp.eq.s32.totalorder %s23, 1
      %p98 = por %p96, %p97
      %p100 = scmp.ne.s32.totalorder %s83, %s99
      %p101 = scmp.eq.s32.totalorder %s23, 0
      %p102 = por %p100, %p101
      %s104 = sadd.s32 %s103, 1
      %p107 = scmp.eq.s32.totalorder %s17, 1
      %p108 = scmp.ne.s32.totalorder %s103, %s105
      %p109 = scmp.eq.s32.totalorder %s17, 0
      %p110 = por %p108, %p109
      %p111 = scmp.ne.s32.totalorder %s103, %s105
      %p112 = scmp.eq.s32.totalorder %s22, 1
      %p113 = por %p111, %p112
      %p114 = scmp.ne.s32.totalorder %s105, %s106
      %p115 = scmp.eq.s32.totalorder %s22, 0
      %p116 = por %p114, %p115
      %p117 = scmp.ne.s32.totalorder %s105, %s106
      %p118 = scmp.eq.s32.totalorder %s23, 1
      %p119 = por %p117, %p118
      %p121 = scmp.ne.s32.totalorder %s106, %s120
      %p122 = scmp.eq.s32.totalorder %s23, 0
      %p123 = por %p121, %p122
      %s125 = sadd.s32 %s124, 1
      %p128 = scmp.eq.s32.totalorder %s17, 1
      %p129 = scmp.ne.s32.totalorder %s124, %s126
      %p130 = scmp.eq.s32.totalorder %s17, 0
      %p131 = por %p129, %p130
      %p132 = scmp.ne.s32.totalorder %s124, %s126
      %p133 = scmp.eq.s32.totalorder %s22, 1
      %p134 = por %p132, %p133
      %p135 = scmp.ne.s32.totalorder %s126, %s127
      %p136 = scmp.eq.s32.totalorder %s22, 0
      %p137 = por %p135, %p136
      %p138 = scmp.ne.s32.totalorder %s126, %s127
      %p139 = scmp.eq.s32.totalorder %s23, 1
      %p140 = por %p138, %p139
      %p142 = scmp.ne.s32.totalorder %s127, %s141
      %p143 = scmp.eq.s32.totalorder %s23, 0
      %p144 = por %p142, %p143
      %s146 = sadd.s32 %s145, 1
      %p149 = scmp.eq.s32.totalorder %s17, 1
      %p150 = scmp.ne.s32.totalorder %s145, %s147
      %p151 = scmp.eq.s32.totalorder %s17, 0
      %p152 = por %p150, %p151
      %p153 = scmp.ne.s32.totalorder %s145, %s147
      %p154 = scmp.eq.s32.totalorder %s22, 1
      %p155 = por %p153, %p154
      %p156 = scmp.ne.s32.totalorder %s147, %s148
      %p157 = scmp.eq.s32.totalorder %s22, 0
      %p158 = por %p156, %p157
      %p159 = scmp.ne.s32.totalorder %s147, %s148
      %p160 = scmp.eq.s32.totalorder %s23, 1
      %p161 = por %p159, %p160
      %p163 = scmp.ne.s32.totalorder %s148, %s162
      %p164 = scmp.eq.s32.totalorder %s23, 0
      %p165 = por %p163, %p164
      %s167 = sadd.s32 %s166, 1
      %p170 = scmp.eq.s32.totalorder %s17, 1
      %p171 = scmp.ne.s32.totalorder %s166, %s168
      %p172 = scmp.eq.s32.totalorder %s17, 0
      %p173 = por %p171, %p172
      %p174 = scmp.ne.s32.totalorder %s166, %s168
      %p175 = scmp.eq.s32.totalorder %s22, 1
      %p176 = por %p174, %p175
      %p177 = scmp.ne.s32.totalorder %s168, %s169
      %p178 = scmp.eq.s32.totalorder %s22, 0
      %p179 = por %p177, %p178
      %p180 = scmp.ne.s32.totalorder %s168, %s169
      %p181 = scmp.eq.s32.totalorder %s23, 1
      %p182 = por %p180, %p181
      %p184 = scmp.ne.s32.totalorder %s169, %s183
      %p185 = scmp.eq.s32.totalorder %s23, 0
      %p186 = por %p184, %p185
      %s187 = ssub.s32 %s17, %s24
      %p188 = scmp.eq.s32.totalorder %s187, 0
      %s190 = sadd.s32 %s189, 1
      %s191 = scalar_select %p188, %s189, %s190
      %p194 = pneg %p188
      %p195 = scmp.eq.s32.totalorder %s17, 1
      %p196 = por %p194, %p195
      %p197 = scmp.ne.s32.totalorder %s189, %s192
      %p198 = scmp.eq.s32.totalorder %s17, 0
      %p199 = por %p197, %p198
      %p200 = scmp.ne.s32.totalorder %s189, %s192
      %p201 = scmp.eq.s32.totalorder %s22, 1
      %p202 = por %p200, %p201
      %p203 = scmp.ne.s32.totalorder %s192, %s193
      %p204 = scmp.eq.s32.totalorder %s22, 0
      %p205 = por %p203, %p204
      %p206 = scmp.ne.s32.totalorder %s192, %s193
      %p207 = scmp.eq.s32.totalorder %s23, 1
      %p208 = por %p206, %p207
      %p210 = scmp.ne.s32.totalorder %s193, %s209
      %p211 = scmp.eq.s32.totalorder %s23, 0
      %p212 = por %p210, %p211
      %p213 = scmp.le.s32.totalorder 1, %s17
      %p214 = scmp.lt.s32.totalorder %s17, 3
      %p215 = pnand %p213, %p214
      %p216 = pneg %p215
      // Predicated region
      $region9: #{_lambda_.3} parent=5 // pred_check
        _
      $region10: #{_lambda_.3} parent=5 // pred_check_branch
        %218 = sbr.rel (%p215) target = $region12
      $region11: #{_lambda_.3} parent=5 // pred_region
        %s219 = ssub.s32 %s17, 1
        // Predicated region
        $region13: #{_lambda_.3} parent=11 // pred_check
          %p220 = pneg %p116
        $region14: #{_lambda_.3} parent=11 // pred_check_branch
          %222 = sbr.rel (%p220) target = $region16
        $region15: #{_lambda_.3} parent=11 // pred_region
          %224 = vsyncadd [#allocation6], 0
          %s226 = sshll.u32 %s3, 4
          %s227 = int_to_ptr.vmem [resolvable:$true] %s226
          %229 = dma.vmem_to_smem %s227, 16, [#allocation5], [#allocation6]
        $region16: #{_lambda_.3} parent=11 // pred_fallthru
          _
        // Predicated region
        $region17: #{_lambda_.3} parent=11 // pred_check
          %p230 = pneg %p137
        $region18: #{_lambda_.3} parent=11 // pred_check_branch
          %232 = sbr.rel (%p230) target = $region20
        $region19: #{_lambda_.3} parent=11 // pred_region
          _
        $region20: #{_lambda_.3} parent=11 // pred_fallthru
          _
        // Predicated region
        $region21: #{_lambda_.3} parent=11 // pred_check
          %p233 = pneg %p158
        $region22: #{_lambda_.3} parent=11 // pred_check_branch
          %235 = sbr.rel (%p233) target = $region24
        $region23: #{_lambda_.3} parent=11 // pred_region
          %237 = vsyncadd [#allocation8], 0
          %s239 = sshll.u32 %s5, 4
          %s240 = int_to_ptr.vmem [resolvable:$true] %s239
          %242 = dma.vmem_to_smem %s240, 16, [#allocation7], [#allocation8]
        $region24: #{_lambda_.3} parent=11 // pred_fallthru
          _
        // Predicated region
        $region25: #{_lambda_.3} parent=11 // pred_check
          %p243 = pneg %p179
        $region26: #{_lambda_.3} parent=11 // pred_check_branch
          %245 = sbr.rel (%p243) target = $region28
        $region27: #{_lambda_.3} parent=11 // pred_region
          _
        $region28: #{_lambda_.3} parent=11 // pred_fallthru
          _
      $region12: #{_lambda_.3} parent=5 // pred_fallthru
        _
      %p246 = scmp.lt.s32.totalorder %s17, 2
      // Predicated region
      $region29: #{_lambda_.3} parent=5 // pred_check
        %p247 = pneg %p246
      $region30: #{_lambda_.3} parent=5 // pred_check_branch
        %249 = sbr.rel (%p247) target = $region32
      $region31: #{_lambda_.3} parent=5 // pred_region
        // Predicated region
        $region33: #{_lambda_.3} parent=31 // pred_check
          %p250 = pneg %p37
        $region34: #{_lambda_.3} parent=31 // pred_check_branch
          %252 = sbr.rel (%p250) target = $region36
        $region35: #{_lambda_.3} parent=31 // pred_region
          %p253 = scmp.lt.s32.totalorder %s17, 1
          %s254 = scalar_select %p253, %s17, 1
          %s255 = smul.addr %s254, 2
          %s256 = smul.addr %s255, 8
          %s257 = scalar_lea.vmem %s0, %s256
        $region36: #{_lambda_.3} parent=31 // pred_fallthru
          _
        // Predicated region
        $region37: #{_lambda_.3} parent=31 // pred_check
          %p258 = pneg %p63
        $region38: #{_lambda_.3} parent=31 // pred_check_branch
          %260 = sbr.rel (%p258) target = $region40
        $region39: #{_lambda_.3} parent=31 // pred_region
          %p261 = scmp.lt.s32.totalorder %s17, 1
          %s262 = scalar_select %p261, %s17, 1
          %s263 = smul.addr %s262, 2
          %s264 = smul.addr %s263, 8
          %s265 = scalar_lea.vmem %s1, %s264
        $region40: #{_lambda_.3} parent=31 // pred_fallthru
          _
        // Predicated region
        $region41: #{_lambda_.3} parent=31 // pred_check
          %p266 = pneg %p89
        $region42: #{_lambda_.3} parent=31 // pred_check_branch
          %268 = sbr.rel (%p266) target = $region44
        $region43: #{_lambda_.3} parent=31 // pred_region
          %p269 = scmp.lt.s32.totalorder %s17, 1
          %s270 = scalar_select %p269, %s17, 1
          %s271 = smul.addr %s270, 2
          %s272 = smul.addr %s271, 8
          %s273 = scalar_lea.vmem %s2, %s272
        $region44: #{_lambda_.3} parent=31 // pred_fallthru
          _
      $region32: #{_lambda_.3} parent=5 // pred_fallthru
        _
      %p274 = scmp.le.s32.totalorder 1, %s17
      %p275 = scmp.lt.s32.totalorder %s17, 3
      %p276 = pnand %p274, %p275
      %p277 = pneg %p276
      // Predicated region
      $region45: #{_lambda_.3} parent=5 // pred_check
        _
      $region46: #{_lambda_.3} parent=5 // pred_check_branch
        %279 = sbr.rel (%p276) target = $region48
      $region47: #{_lambda_.3} parent=5 // pred_region
        %s280 = ssub.s32 %s17, 1
        // Predicated region
        $region49: #{_lambda_.3} parent=47 // pred_check
          %p281 = pneg %p116
        $region50: #{_lambda_.3} parent=47 // pred_check_branch
          %283 = sbr.rel (%p281) target = $region52
        $region51: #{_lambda_.3} parent=47 // pred_region
          %285 = dma.done [#allocation6], 16
        $region52: #{_lambda_.3} parent=47 // pred_fallthru
          _
        // Predicated region
        $region53: #{_lambda_.3} parent=47 // pred_check
          %p286 = pneg %p158
        $region54: #{_lambda_.3} parent=47 // pred_check_branch
          %288 = sbr.rel (%p286) target = $region56
        $region55: #{_lambda_.3} parent=47 // pred_region
          %290 = dma.done [#allocation8], 16
        $region56: #{_lambda_.3} parent=47 // pred_fallthru
          _
        %291 = sfence
        %p292 = scmp.lt.s32.totalorder %s22, 1
        %s293 = scalar_select %p292, %s22, 1
        %s294 = smul.addr %s293, 2
        %s295 = smul.addr %s294, 8
        %s296 = scalar_lea.vmem %s0, %s295
        %p297 = pneg %p43
        %p298 = pneg %p40
        %p299 = scmp.lt.s32.totalorder %s22, 1
        %s300 = scalar_select %p299, %s22, 1
        %s301 = smul.addr %s300, 2
        %s302 = smul.addr %s301, 8
        %s303 = scalar_lea.vmem %s1, %s302
        %p304 = pneg %p69
        %p305 = pneg %p66
        %p306 = scmp.lt.s32.totalorder %s22, 1
        %s307 = scalar_select %p306, %s22, 1
        %s308 = smul.addr %s307, 2
        %s309 = smul.addr %s308, 8
        %s310 = scalar_lea.vmem %s2, %s309
        %p311 = pneg %p95
        %p312 = pneg %p92
        %p313 = pneg %p116
        %p314 = pneg %p113
        %p315 = pneg %p137
        %p316 = pneg %p134
        %p317 = pneg %p158
        %p318 = pneg %p155
        %p319 = pneg %p179
        %p320 = pneg %p176
        %p321 = pneg %p205
        %p322 = pneg %p202
        %p323 = scmp.lt.s32.totalorder %s22, 1
        %s324 = scalar_select %p323, %s22, 1
        %s325 = smul.addr %s324, 8
        %s326 = smul.addr %s325, 8
        %s327 = scalar_lea.vmem %s7, %s326
        %p328 = scmp.lt.s32.totalorder %s22, 1
        %s329 = scalar_select %p328, %s22, 1
        %s330 = smul.addr %s329, 2
        %s331 = smul.addr %s330, 8
        %s332 = scalar_lea.vmem %s0, %s331
        %p333 = scmp.lt.s32.totalorder %s22, 1
        %s334 = scalar_select %p333, %s22, 1
        %s335 = smul.addr %s334, 2
        %s336 = smul.addr %s335, 8
        %s337 = scalar_lea.vmem %s1, %s336
        %p338 = scmp.lt.s32.totalorder %s22, 1
        %s339 = scalar_select %p338, %s22, 1
        %s340 = smul.addr %s339, 2
        %s341 = smul.addr %s340, 8
        %s342 = scalar_lea.vmem %s2, %s341
        %p343 = scmp.lt.s32.totalorder %s22, 1
        %s344 = scalar_select %p343, %s22, 1
        %s345 = smul.addr %s344, 8
        %s346 = smul.addr %s345, 8
        %s347 = scalar_lea.vmem %s7, %s346
        %s348 = sld [smem:[#allocation3]]
        %s349 = sld [smem:[#allocation5]]
        %v350 = vld [vmem:[%s332] sm:$0xff]
        %v351 = vld [vmem:[%s332 + $0x8] sm:$0xff]
        %v352 = vstv %s349
        %v353 = vmul.f32 %v352, %v350
        %v354 = vmul.f32 %v352, %v351
        %v355 = vstv %s348
        %v356 = vadd.f32 %v355, %v353
        %v357 = vadd.f32 %v355, %v354
        %s358 = sld [smem:[#allocation5 + $0x1]]
        %v359 = vld [vmem:[%s337] sm:$0xff]
        %v360 = vld [vmem:[%s337 + $0x8] sm:$0xff]
        %v361 = vstv %s358
        %v362 = vmul.f32 %v361, %v359
        %v363 = vmul.f32 %v361, %v360
        %v364 = vadd.f32 %v356, %v362
        %v365 = vadd.f32 %v357, %v363
        %s366 = sld [smem:[#allocation5 + $0x2]]
        %v367 = vld [vmem:[%s342] sm:$0xff]
        %v368 = vld [vmem:[%s342 + $0x8] sm:$0xff]
        %v369 = vstv %s366
        %v370 = vmul.f32 %v369, %v367
        %v371 = vmul.f32 %v369, %v368
        %v372 = vadd.f32 %v364, %v370
        %v373 = vadd.f32 %v365, %v371
        %374 = vst [vmem:[#allocation2] sm:$0xff] 0.0
        %375 = vst [vmem:[#allocation2 + $0x8] sm:$0xff] 0.0
        %376 = vst [vmem:[#allocation2 + $0x10] sm:$0xff] 0.0
        %379 = vrot.lane.b32.xlu0 %v372, 1
        %v380 = vpop.permute.xlu0 %379
        %381 = vrot.lane.b32.xlu0 %v373, 1
        %v382 = vpop.permute.xlu0 %381
        %vm385 = vcmask 138248
        %386 = vst.msk [vmem:[#allocation2 + $0x1] sm:$0xff] %vm385, %v380
        %387 = vst.msk [vmem:[#allocation2 + $0x9] sm:$0xff] %vm385, %v382
        %v388 = vld [vmem:[#allocation2 + $0x1] sm:$0xff]
        %v389 = vld [vmem:[#allocation2 + $0x9] sm:$0xff]
        %s390 = sld [smem:[#allocation7 + $0x5]]
        %v391 = vstv %s390
        %v392 = vmul.f32 %v391, %v388
        %v393 = vmul.f32 %v391, %v389
        %s394 = sld [smem:[#allocation7 + $0x7]]
        %v395 = vstv %s394
        %v396 = vmul.f32 %v395, %v388
        %v397 = vmul.f32 %v395, %v389
        %400 = vrot.lane.b32.xlu0 %v396, 1
        %v401 = vpop.permute.xlu0 %400
        %402 = vrot.lane.b32.xlu0 %v397, 1
        %v403 = vpop.permute.xlu0 %402
        %v406 = vadd.f32 %v392, %v401
        %v407 = vadd.f32 %v393, %v403
        %v408 = vld [vmem:[#allocation2] sm:$0xff]
        %v409 = vld [vmem:[#allocation2 + $0x8] sm:$0xff]
        %s410 = sld [smem:[#allocation7 + $0xd]]
        %v411 = vstv %s410
        %v412 = vmul.f32 %v411, %v408
        %v413 = vmul.f32 %v411, %v409
        %v414 = vadd.f32 %v406, %v412
        %v415 = vadd.f32 %v407, %v413
        %s416 = sld [smem:[#allocation7 + $0xf]]
        %v417 = vstv %s416
        %v418 = vmul.f32 %v417, %v408
        %v419 = vmul.f32 %v417, %v409
        %422 = vrot.lane.b32.xlu0 %v418, 1
        %v423 = vpop.permute.xlu0 %422
        %424 = vrot.lane.b32.xlu0 %v419, 1
        %v425 = vpop.permute.xlu0 %424
        %v428 = vadd.f32 %v414, %v423
        %v429 = vadd.f32 %v415, %v425
        %s430 = sld [smem:[#allocation4]]
        %v431 = vstv %s430
        %v432 = vadd.f32 %v428, %v431
        %v433 = vadd.f32 %v429, %v431
        %436 = vrot.lane.b32.xlu0 %v432, 127
        %v437 = vpop.permute.xlu0 %436
        %438 = vrot.lane.b32.xlu0 %v433, 127
        %v439 = vpop.permute.xlu0 %438
        %vm442 = vcmask 130048
        %443 = vst.msk [vmem:[%s347] sm:$0xff] %vm442, %v437
        %444 = vst.msk [vmem:[%s347 + $0x8] sm:$0xff] %vm442, %v439
        %v445 = vld [vmem:[#allocation2 + $0x1] sm:$0xff]
        %v446 = vld [vmem:[#allocation2 + $0x9] sm:$0xff]
        %s447 = sld [smem:[#allocation7 + $0x4]]
        %v448 = vstv %s447
        %v449 = vmul.f32 %v448, %v445
        %v450 = vmul.f32 %v448, %v446
        %s451 = sld [smem:[#allocation7 + $0x6]]
        %v452 = vstv %s451
        %v453 = vmul.f32 %v452, %v388
        %v454 = vmul.f32 %v452, %v389
        %457 = vrot.lane.b32.xlu0 %v453, 1
        %v458 = vpop.permute.xlu0 %457
        %459 = vrot.lane.b32.xlu0 %v454, 1
        %v460 = vpop.permute.xlu0 %459
        %v463 = vadd.f32 %v449, %v458
        %v464 = vadd.f32 %v450, %v460
        %v465 = vld [vmem:[#allocation2] sm:$0xff]
        %v466 = vld [vmem:[#allocation2 + $0x8] sm:$0xff]
        %s467 = sld [smem:[#allocation7 + $0xc]]
        %v468 = vstv %s467
        %v469 = vmul.f32 %v468, %v465
        %v470 = vmul.f32 %v468, %v466
        %v471 = vadd.f32 %v463, %v469
        %v472 = vadd.f32 %v464, %v470
        %s473 = sld [smem:[#allocation7 + $0xe]]
        %v474 = vstv %s473
        %v475 = vmul.f32 %v474, %v408
        %v476 = vmul.f32 %v474, %v409
        %479 = vrot.lane.b32.xlu0 %v475, 1
        %v480 = vpop.permute.xlu0 %479
        %481 = vrot.lane.b32.xlu0 %v476, 1
        %v482 = vpop.permute.xlu0 %481
        %v485 = vadd.f32 %v471, %v480
        %v486 = vadd.f32 %v472, %v482
        %s487 = sld [smem:[#allocation4]]
        %v488 = vstv %s487
        %v489 = vadd.f32 %v485, %v488
        %v490 = vadd.f32 %v486, %v488
        %493 = vrot.lane.b32.xlu0 %v489, 126
        %v494 = vpop.permute.xlu0 %493
        %495 = vrot.lane.b32.xlu0 %v490, 126
        %v496 = vpop.permute.xlu0 %495
        %s499 = scalar_lea.vmem %s347, 16
        %500 = vst.msk [vmem:[%s499] sm:$0xff] %vm442, %v494
        %501 = vst.msk [vmem:[%s499 + $0x8] sm:$0xff] %vm442, %v496
        %v502 = vld [vmem:[#allocation2 + $0x2] sm:$0xff]
        %v503 = vld [vmem:[#allocation2 + $0xa] sm:$0xff]
        %s504 = sld [smem:[#allocation7 + $0x1]]
        %v505 = vstv %s504
        %v506 = vmul.f32 %v505, %v502
        %v507 = vmul.f32 %v505, %v503
        %s508 = sld [smem:[#allocation7 + $0x3]]
        %v509 = vstv %s508
        %v510 = vmul.f32 %v509, %v502
        %v511 = vmul.f32 %v509, %v503
        %514 = vrot.lane.b32.xlu0 %v510, 1
        %v515 = vpop.permute.xlu0 %514
        %516 = vrot.lane.b32.xlu0 %v511, 1
        %v517 = vpop.permute.xlu0 %516
        %v520 = vadd.f32 %v506, %v515
        %v521 = vadd.f32 %v507, %v517
        %s522 = sld [smem:[#allocation7 + $0x9]]
        %v523 = vstv %s522
        %v524 = vmul.f32 %v523, %v388
        %v525 = vmul.f32 %v523, %v389
        %v526 = vadd.f32 %v520, %v524
        %v527 = vadd.f32 %v521, %v525
        %s528 = sld [smem:[#allocation7 + $0xb]]
        %v529 = vstv %s528
        %v530 = vmul.f32 %v529, %v388
        %v531 = vmul.f32 %v529, %v389
        %534 = vrot.lane.b32.xlu0 %v530, 1
        %v535 = vpop.permute.xlu0 %534
        %536 = vrot.lane.b32.xlu0 %v531, 1
        %v537 = vpop.permute.xlu0 %536
        %v540 = vadd.f32 %v526, %v535
        %v541 = vadd.f32 %v527, %v537
        %s542 = sld [smem:[#allocation4]]
        %v543 = vstv %s542
        %v544 = vadd.f32 %v540, %v543
        %v545 = vadd.f32 %v541, %v543
        %548 = vrot.lane.b32.xlu0 %v544, 127
        %v549 = vpop.permute.xlu0 %548
        %550 = vrot.lane.b32.xlu0 %v545, 127
        %v551 = vpop.permute.xlu0 %550
        %s554 = scalar_lea.vmem %s347, 32
        %555 = vst.msk [vmem:[%s554] sm:$0xff] %vm442, %v549
        %556 = vst.msk [vmem:[%s554 + $0x8] sm:$0xff] %vm442, %v551
        %v557 = vld [vmem:[#allocation2 + $0x2] sm:$0xff]
        %v558 = vld [vmem:[#allocation2 + $0xa] sm:$0xff]
        %s559 = sld [smem:[#allocation7]]
        %v560 = vstv %s559
        %v561 = vmul.f32 %v560, %v557
        %v562 = vmul.f32 %v560, %v558
        %s563 = sld [smem:[#allocation7 + $0x2]]
        %v564 = vstv %s563
        %v565 = vmul.f32 %v564, %v502
        %v566 = vmul.f32 %v564, %v503
        %569 = vrot.lane.b32.xlu0 %v565, 1
        %v570 = vpop.permute.xlu0 %569
        %571 = vrot.lane.b32.xlu0 %v566, 1
        %v572 = vpop.permute.xlu0 %571
        %v575 = vadd.f32 %v561, %v570
        %v576 = vadd.f32 %v562, %v572
        %s577 = sld [smem:[#allocation7 + $0x8]]
        %v578 = vstv %s577
        %v579 = vmul.f32 %v578, %v445
        %v580 = vmul.f32 %v578, %v446
        %v581 = vadd.f32 %v575, %v579
        %v582 = vadd.f32 %v576, %v580
        %s583 = sld [smem:[#allocation7 + $0xa]]
        %v584 = vstv %s583
        %v585 = vmul.f32 %v584, %v388
        %v586 = vmul.f32 %v584, %v389
        %589 = vrot.lane.b32.xlu0 %v585, 1
        %v590 = vpop.permute.xlu0 %589
        %591 = vrot.lane.b32.xlu0 %v586, 1
        %v592 = vpop.permute.xlu0 %591
        %v595 = vadd.f32 %v581, %v590
        %v596 = vadd.f32 %v582, %v592
        %s597 = sld [smem:[#allocation4]]
        %v598 = vstv %s597
        %v599 = vadd.f32 %v595, %v598
        %v600 = vadd.f32 %v596, %v598
        %603 = vrot.lane.b32.xlu0 %v599, 126
        %v604 = vpop.permute.xlu0 %603
        %605 = vrot.lane.b32.xlu0 %v600, 126
        %v606 = vpop.permute.xlu0 %605
        %s609 = scalar_lea.vmem %s347, 48
        %610 = vst.msk [vmem:[%s609] sm:$0xff] %vm442, %v604
        %611 = vst.msk [vmem:[%s609 + $0x8] sm:$0xff] %vm442, %v606
        %p612 = scmp.lt.s32.totalorder %s22, 1
        %s613 = scalar_select %p612, %s22, 1
        %s614 = smul.addr %s613, 8
        %s615 = smul.addr %s614, 8
        %s616 = scalar_lea.vmem %s7, %s615
        // Predicated region
        $region57: #{_lambda_.3} parent=47 // pred_check
          %p617 = pneg %p202
        $region58: #{_lambda_.3} parent=47 // pred_check_branch
          %619 = sbr.rel (%p617) target = $region60
        $region59: #{_lambda_.3} parent=47 // pred_region
          _
        $region60: #{_lambda_.3} parent=47 // pred_fallthru
          _
      $region48: #{_lambda_.3} parent=5 // pred_fallthru
        _
      %p620 = scmp.le.s32.totalorder 2, %s17
      // Predicated region
      $region61: #{_lambda_.3} parent=5 // pred_check
        %p621 = pneg %p620
      $region62: #{_lambda_.3} parent=5 // pred_check_branch
        %623 = sbr.rel (%p621) target = $region64
      $region63: #{_lambda_.3} parent=5 // pred_region
        %s624 = ssub.s32 %s17, 2
        // Predicated region
        $region65: #{_lambda_.3} parent=63 // pred_check
          %p625 = pneg %p208
        $region66: #{_lambda_.3} parent=63 // pred_check_branch
          %627 = sbr.rel (%p625) target = $region68
        $region67: #{_lambda_.3} parent=63 // pred_region
          %p628 = scmp.lt.s32.totalorder %s23, 1
          %s629 = scalar_select %p628, %s23, 1
          %s630 = smul.addr %s629, 8
          %s631 = smul.addr %s630, 8
          %s632 = scalar_lea.vmem %s7, %s631
        $region68: #{_lambda_.3} parent=63 // pred_fallthru
          _
      $region64: #{_lambda_.3} parent=5 // pred_fallthru
        _
    $region6: #{_lambda_.3} parent=1 // loop_footer
      %s21 = sadd.s32 1, %s17
    $region7: #{_lambda_.3} parent=1 // loop_footer_branch
      %16 = sbr.rel target = $region3
    $region8: #{_lambda_.3} parent=1 // loop_exit
      _
    %633 = vsyncpa [#allocation6], 1
    %s634 = scalar_lea.sflag [#allocation6], 1
    %635 = vsyncpa %s634, 1
    %636 = vsyncpa [#allocation8], 1

// kernel: _lambda_.2
$region0: #{_lambda_.2}
  #allocation0 [shape = 'u32[]', space=smem, size = 0x4, offset = 0x4, fixed_abs, tag = 'smem constant byte address 0x4 - core index']
  #allocation1 [shape = 'u32[72,128]{1,0:T(1,128)}', space=vmem, size = 0x9000, scoped, tag = 'internal scratch']
  #allocation2 [shape = 'f32[1]{0:T(128)S(6)}', space=smem, size = 0x200, scoped, tag = 'scoped memory for _lambda_.2']
  #allocation3 [shape = 'f32[1]{0:T(128)S(6)}', space=smem, size = 0x200, scoped, tag = 'scoped memory for _lambda_.2']
  %s0 = inlined_call_operand.vmem [shape: f32[2,10,10], index: 0, kind: input, shape index: {}]
  %s1 = inlined_call_operand.vmem [shape: f32[2,6,6], index: 1, kind: input, shape index: {}]
  %s2 = inlined_call_operand.vmem [shape: f32[16], index: 2, kind: input, shape index: {}]
  %s3 = inlined_call_operand.vmem [shape: f32[64], index: 3, kind: input, shape index: {}]
  %s4 = inlined_call_operand.<no memory space> [shape: f32[1], index: 4, kind: input, shape index: {}]
  %s5 = inlined_call_operand.<no memory space> [shape: f32[1], index: 5, kind: input, shape index: {}]
  %s6 = inlined_call_operand.vmem [shape: f32[2,4,8,8], index: 6, kind: output, shape index: {0}]
  %s7 = inlined_call_operand.vmem [shape: f32[2,16,4,4], index: 7, kind: output, shape index: {1}]
  %8 = xla_tuple %s6, %s7
  %s9 = sld [smem:[#allocation0]]
  $region73: #{_lambda_.2} parent=0
    _
  %s11 = ssub.s32 1, %s9
  %s12 = scalar_select 0, %s11, %s9
  %13 = sst [smem:[#allocation2]] %s4
  %14 = sst [smem:[#allocation3]] %s5
  $region1: #{_lambda_.2} parent=0
    #allocation4 [shape = 'u8[512]{0}', space=smem, size = 0x200, scoped, tag = 'input window, operand 2, single buffered']
    #allocation5 [shape = 's32[2]{0}', space=sflag, size = 0x8, scoped, tag = 'scoped memory for _lambda_.2']
    #allocation6 [shape = 'u8[512]{0}', space=smem, size = 0x200, scoped, tag = 'input window, operand 3, single buffered']
    #allocation7 [shape = 's32[1]{0}', space=sflag, size = 0x4, scoped, tag = 'scoped memory for _lambda_.2']
    %15 = vsyncpa [#allocation5], 0
    %16 = vsyncpa [#allocation7], 0
    loop: start=0, step=1, limit=4
    $region2: #{_lambda_.2} parent=1 // loop_pre_header
      _
    $region3: #{_lambda_.2} parent=1 // loop_header
      %s18 = sphi 0, %s22
      %p19 = scmp.ge.s32.totalorder %s18, 4
      %s28 = sphi 0, %s30
      %s31 = sphi 0, %s28
      %s32 = sphi 0, %s31
      %s48 = sphi 0, %s32
      %s54 = sphi 0, %s56
      %s57 = sphi 0, %s54
      %s58 = sphi 0, %s57
      %s74 = sphi 0, %s58
      %s78 = sphi 0, %s78
      %s80 = sphi 0, %s78
      %s81 = sphi 0, %s80
      %s95 = sphi 0, %s81
      %s99 = sphi 0, %s99
      %s101 = sphi 0, %s99
      %s102 = sphi 0, %s101
      %s116 = sphi 0, %s102
      %s120 = sphi 0, %s120
      %s122 = sphi 0, %s120
      %s123 = sphi 0, %s122
      %s137 = sphi 0, %s123
      %s141 = sphi 0, %s141
      %s143 = sphi 0, %s141
      %s144 = sphi 0, %s143
      %s158 = sphi 0, %s144
      %s164 = sphi 0, %s166
      %s167 = sphi 0, %s164
      %s168 = sphi 0, %s167
      %s184 = sphi 0, %s168
      %s190 = sphi 0, %s192
      %s193 = sphi 0, %s190
      %s194 = sphi 0, %s193
      %s210 = sphi 0, %s194
    $region4: #{_lambda_.2} parent=1 // loop_header_branch
      %21 = sbr.rel (%p19) target = $region8
    $region5: #{_lambda_.2} parent=1 // loop_body
      %s23 = ssub.s32 %s18, 1
      %s24 = ssub.s32 %s18, 2
      %s25 = sadd.s32 %s18, 1
      %s26 = ssub.s32 %s18, %s25
      %p27 = scmp.eq.s32.totalorder %s26, 0
      %s29 = sadd.s32 %s28, 1
      %s30 = scalar_select %p27, %s28, %s29
      %p33 = pneg %p27
      %p34 = scmp.eq.s32.totalorder %s18, 1
      %p35 = por %p33, %p34
      %p36 = scmp.ne.s32.totalorder %s28, %s31
      %p37 = scmp.eq.s32.totalorder %s18, 0
      %p38 = por %p36, %p37
      %p39 = scmp.ne.s32.totalorder %s28, %s31
      %p40 = scmp.eq.s32.totalorder %s23, 1
      %p41 = por %p39, %p40
      %p42 = scmp.ne.s32.totalorder %s31, %s32
      %p43 = scmp.eq.s32.totalorder %s23, 0
      %p44 = por %p42, %p43
      %p45 = scmp.ne.s32.totalorder %s31, %s32
      %p46 = scmp.eq.s32.totalorder %s24, 1
      %p47 = por %p45, %p46
      %p49 = scmp.ne.s32.totalorder %s32, %s48
      %p50 = scmp.eq.s32.totalorder %s24, 0
      %p51 = por %p49, %p50
      %s52 = ssub.s32 %s18, %s25
      %p53 = scmp.eq.s32.totalorder %s52, 0
      %s55 = sadd.s32 %s54, 1
      %s56 = scalar_select %p53, %s54, %s55
      %p59 = pneg %p53
      %p60 = scmp.eq.s32.totalorder %s18, 1
      %p61 = por %p59, %p60
      %p62 = scmp.ne.s32.totalorder %s54, %s57
      %p63 = scmp.eq.s32.totalorder %s18, 0
      %p64 = por %p62, %p63
      %p65 = scmp.ne.s32.totalorder %s54, %s57
      %p66 = scmp.eq.s32.totalorder %s23, 1
      %p67 = por %p65, %p66
      %p68 = scmp.ne.s32.totalorder %s57, %s58
      %p69 = scmp.eq.s32.totalorder %s23, 0
      %p70 = por %p68, %p69
      %p71 = scmp.ne.s32.totalorder %s57, %s58
      %p72 = scmp.eq.s32.totalorder %s24, 1
      %p73 = por %p71, %p72
      %p75 = scmp.ne.s32.totalorder %s58, %s74
      %p76 = scmp.eq.s32.totalorder %s24, 0
      %p77 = por %p75, %p76
      %s79 = sadd.s32 %s78, 1
      %p82 = scmp.eq.s32.totalorder %s18, 1
      %p83 = scmp.ne.s32.totalorder %s78, %s80
      %p84 = scmp.eq.s32.totalorder %s18, 0
      %p85 = por %p83, %p84
      %p86 = scmp.ne.s32.totalorder %s78, %s80
      %p87 = scmp.eq.s32.totalorder %s23, 1
      %p88 = por %p86, %p87
      %p89 = scmp.ne.s32.totalorder %s80, %s81
      %p90 = scmp.eq.s32.totalorder %s23, 0
      %p91 = por %p89, %p90
      %p92 = scmp.ne.s32.totalorder %s80, %s81
      %p93 = scmp.eq.s32.totalorder %s24, 1
      %p94 = por %p92, %p93
      %p96 = scmp.ne.s32.totalorder %s81, %s95
      %p97 = scmp.eq.s32.totalorder %s24, 0
      %p98 = por %p96, %p97
      %s100 = sadd.s32 %s99, 1
      %p103 = scmp.eq.s32.totalorder %s18, 1
      %p104 = scmp.ne.s32.totalorder %s99, %s101
      %p105 = scmp.eq.s32.totalorder %s18, 0
      %p106 = por %p104, %p105
      %p107 = scmp.ne.s32.totalorder %s99, %s101
      %p108 = scmp.eq.s32.totalorder %s23, 1
      %p109 = por %p107, %p108
      %p110 = scmp.ne.s32.totalorder %s101, %s102
      %p111 = scmp.eq.s32.totalorder %s23, 0
      %p112 = por %p110, %p111
      %p113 = scmp.ne.s32.totalorder %s101, %s102
      %p114 = scmp.eq.s32.totalorder %s24, 1
      %p115 = por %p113, %p114
      %p117 = scmp.ne.s32.totalorder %s102, %s116
      %p118 = scmp.eq.s32.totalorder %s24, 0
      %p119 = por %p117, %p118
      %s121 = sadd.s32 %s120, 1
      %p124 = scmp.eq.s32.totalorder %s18, 1
      %p125 = scmp.ne.s32.totalorder %s120, %s122
      %p126 = scmp.eq.s32.totalorder %s18, 0
      %p127 = por %p125, %p126
      %p128 = scmp.ne.s32.totalorder %s120, %s122
      %p129 = scmp.eq.s32.totalorder %s23, 1
      %p130 = por %p128, %p129
      %p131 = scmp.ne.s32.totalorder %s122, %s123
      %p132 = scmp.eq.s32.totalorder %s23, 0
      %p133 = por %p131, %p132
      %p134 = scmp.ne.s32.totalorder %s122, %s123
      %p135 = scmp.eq.s32.totalorder %s24, 1
      %p136 = por %p134, %p135
      %p138 = scmp.ne.s32.totalorder %s123, %s137
      %p139 = scmp.eq.s32.totalorder %s24, 0
      %p140 = por %p138, %p139
      %s142 = sadd.s32 %s141, 1
      %p145 = scmp.eq.s32.totalorder %s18, 1
      %p146 = scmp.ne.s32.totalorder %s141, %s143
      %p147 = scmp.eq.s32.totalorder %s18, 0
      %p148 = por %p146, %p147
      %p149 = scmp.ne.s32.totalorder %s141, %s143
      %p150 = scmp.eq.s32.totalorder %s23, 1
      %p151 = por %p149, %p150
      %p152 = scmp.ne.s32.totalorder %s143, %s144
      %p153 = scmp.eq.s32.totalorder %s23, 0
      %p154 = por %p152, %p153
      %p155 = scmp.ne.s32.totalorder %s143, %s144
      %p156 = scmp.eq.s32.totalorder %s24, 1
      %p157 = por %p155, %p156
      %p159 = scmp.ne.s32.totalorder %s144, %s158
      %p160 = scmp.eq.s32.totalorder %s24, 0
      %p161 = por %p159, %p160
      %s162 = ssub.s32 %s18, %s25
      %p163 = scmp.eq.s32.totalorder %s162, 0
      %s165 = sadd.s32 %s164, 1
      %s166 = scalar_select %p163, %s164, %s165
      %p169 = pneg %p163
      %p170 = scmp.eq.s32.totalorder %s18, 1
      %p171 = por %p169, %p170
      %p172 = scmp.ne.s32.totalorder %s164, %s167
      %p173 = scmp.eq.s32.totalorder %s18, 0
      %p174 = por %p172, %p173
      %p175 = scmp.ne.s32.totalorder %s164, %s167
      %p176 = scmp.eq.s32.totalorder %s23, 1
      %p177 = por %p175, %p176
      %p178 = scmp.ne.s32.totalorder %s167, %s168
      %p179 = scmp.eq.s32.totalorder %s23, 0
      %p180 = por %p178, %p179
      %p181 = scmp.ne.s32.totalorder %s167, %s168
      %p182 = scmp.eq.s32.totalorder %s24, 1
      %p183 = por %p181, %p182
      %p185 = scmp.ne.s32.totalorder %s168, %s184
      %p186 = scmp.eq.s32.totalorder %s24, 0
      %p187 = por %p185, %p186
      %s188 = ssub.s32 %s18, %s25
      %p189 = scmp.eq.s32.totalorder %s188, 0
      %s191 = sadd.s32 %s190, 1
      %s192 = scalar_select %p189, %s190, %s191
      %p195 = pneg %p189
      %p196 = scmp.eq.s32.totalorder %s18, 1
      %p197 = por %p195, %p196
      %p198 = scmp.ne.s32.totalorder %s190, %s193
      %p199 = scmp.eq.s32.totalorder %s18, 0
      %p200 = por %p198, %p199
      %p201 = scmp.ne.s32.totalorder %s190, %s193
      %p202 = scmp.eq.s32.totalorder %s23, 1
      %p203 = por %p201, %p202
      %p204 = scmp.ne.s32.totalorder %s193, %s194
      %p205 = scmp.eq.s32.totalorder %s23, 0
      %p206 = por %p204, %p205
      %p207 = scmp.ne.s32.totalorder %s193, %s194
      %p208 = scmp.eq.s32.totalorder %s24, 1
      %p209 = por %p207, %p208
      %p211 = scmp.ne.s32.totalorder %s194, %s210
      %p212 = scmp.eq.s32.totalorder %s24, 0
      %p213 = por %p211, %p212
      %p214 = scmp.le.s32.totalorder 1, %s18
      %p215 = scmp.lt.s32.totalorder %s18, 3
      %p216 = pnand %p214, %p215
      %p217 = pneg %p216
      // Predicated region
      $region9: #{_lambda_.2} parent=5 // pred_check
        _
      $region10: #{_lambda_.2} parent=5 // pred_check_branch
        %219 = sbr.rel (%p216) target = $region12
      $region11: #{_lambda_.2} parent=5 // pred_region
        %s220 = ssub.s32 %s18, 1
        // Predicated region
        $region13: #{_lambda_.2} parent=11 // pred_check
          %p221 = pneg %p91
        $region14: #{_lambda_.2} parent=11 // pred_check_branch
          %223 = sbr.rel (%p221) target = $region16
        $region15: #{_lambda_.2} parent=11 // pred_region
          %225 = vsyncadd [#allocation5], 0
          %s227 = sshll.u32 %s2, 4
          %s228 = int_to_ptr.vmem [resolvable:$true] %s227
          %230 = dma.vmem_to_smem %s228, 16, [#allocation4], [#allocation5]
        $region16: #{_lambda_.2} parent=11 // pred_fallthru
          _
        // Predicated region
        $region17: #{_lambda_.2} parent=11 // pred_check
          %p231 = pneg %p112
        $region18: #{_lambda_.2} parent=11 // pred_check_branch
          %233 = sbr.rel (%p231) target = $region20
        $region19: #{_lambda_.2} parent=11 // pred_region
          %235 = vsyncadd [#allocation7], 0
          %s237 = sshll.u32 %s3, 4
          %s238 = int_to_ptr.vmem [resolvable:$true] %s237
          %240 = dma.vmem_to_smem %s238, 16, [#allocation6], [#allocation7]
        $region20: #{_lambda_.2} parent=11 // pred_fallthru
          _
        // Predicated region
        $region21: #{_lambda_.2} parent=11 // pred_check
          %p241 = pneg %p133
        $region22: #{_lambda_.2} parent=11 // pred_check_branch
          %243 = sbr.rel (%p241) target = $region24
        $region23: #{_lambda_.2} parent=11 // pred_region
          _
        $region24: #{_lambda_.2} parent=11 // pred_fallthru
          _
        // Predicated region
        $region25: #{_lambda_.2} parent=11 // pred_check
          %p244 = pneg %p154
        $region26: #{_lambda_.2} parent=11 // pred_check_branch
          %246 = sbr.rel (%p244) target = $region28
        $region27: #{_lambda_.2} parent=11 // pred_region
          _
        $region28: #{_lambda_.2} parent=11 // pred_fallthru
          _
      $region12: #{_lambda_.2} parent=5 // pred_fallthru
        _
      %p247 = scmp.lt.s32.totalorder %s18, 2
      // Predicated region
      $region29: #{_lambda_.2} parent=5 // pred_check
        %p248 = pneg %p247
      $region30: #{_lambda_.2} parent=5 // pred_check_branch
        %250 = sbr.rel (%p248) target = $region32
      $region31: #{_lambda_.2} parent=5 // pred_region
        // Predicated region
        $region33: #{_lambda_.2} parent=31 // pred_check
          %p251 = pneg %p38
        $region34: #{_lambda_.2} parent=31 // pred_check_branch
          %253 = sbr.rel (%p251) target = $region36
        $region35: #{_lambda_.2} parent=31 // pred_region
          %p254 = scmp.lt.s32.totalorder %s18, 1
          %s255 = scalar_select %p254, %s18, 1
          %s256 = smul.addr %s255, 2
          %s257 = smul.addr %s256, 8
          %s258 = scalar_lea.vmem %s0, %s257
        $region36: #{_lambda_.2} parent=31 // pred_fallthru
          _
        // Predicated region
        $region37: #{_lambda_.2} parent=31 // pred_check
          %p259 = pneg %p64
        $region38: #{_lambda_.2} parent=31 // pred_check_branch
          %261 = sbr.rel (%p259) target = $region40
        $region39: #{_lambda_.2} parent=31 // pred_region
          %p262 = scmp.lt.s32.totalorder %s18, 1
          %s263 = scalar_select %p262, %s18, 1
          %s264 = smul.addr %s263, 8
          %s265 = scalar_lea.vmem %s1, %s264
        $region40: #{_lambda_.2} parent=31 // pred_fallthru
          _
      $region32: #{_lambda_.2} parent=5 // pred_fallthru
        _
      %p266 = scmp.le.s32.totalorder 1, %s18
      %p267 = scmp.lt.s32.totalorder %s18, 3
      %p268 = pnand %p266, %p267
      %p269 = pneg %p268
      // Predicated region
      $region41: #{_lambda_.2} parent=5 // pred_check
        _
      $region42: #{_lambda_.2} parent=5 // pred_check_branch
        %271 = sbr.rel (%p268) target = $region44
      $region43: #{_lambda_.2} parent=5 // pred_region
        %s272 = ssub.s32 %s18, 1
        // Predicated region
        $region45: #{_lambda_.2} parent=43 // pred_check
          %p273 = pneg %p91
        $region46: #{_lambda_.2} parent=43 // pred_check_branch
          %275 = sbr.rel (%p273) target = $region48
        $region47: #{_lambda_.2} parent=43 // pred_region
          %277 = dma.done [#allocation5], 16
        $region48: #{_lambda_.2} parent=43 // pred_fallthru
          _
        // Predicated region
        $region49: #{_lambda_.2} parent=43 // pred_check
          %p278 = pneg %p112
        $region50: #{_lambda_.2} parent=43 // pred_check_branch
          %280 = sbr.rel (%p278) target = $region52
        $region51: #{_lambda_.2} parent=43 // pred_region
          %282 = dma.done [#allocation7], 16
        $region52: #{_lambda_.2} parent=43 // pred_fallthru
          _
        %283 = sfence
        %p284 = scmp.lt.s32.totalorder %s23, 1
        %s285 = scalar_select %p284, %s23, 1
        %s286 = smul.addr %s285, 2
        %s287 = smul.addr %s286, 8
        %s288 = scalar_lea.vmem %s0, %s287
        %p289 = pneg %p44
        %p290 = pneg %p41
        %p291 = scmp.lt.s32.totalorder %s23, 1
        %s292 = scalar_select %p291, %s23, 1
        %s293 = smul.addr %s292, 8
        %s294 = scalar_lea.vmem %s1, %s293
        %p295 = pneg %p70
        %p296 = pneg %p67
        %p297 = pneg %p91
        %p298 = pneg %p88
        %p299 = pneg %p112
        %p300 = pneg %p109
        %p301 = pneg %p133
        %p302 = pneg %p130
        %p303 = pneg %p154
        %p304 = pneg %p151
        %p305 = pneg %p180
        %p306 = pneg %p177
        %p307 = scmp.lt.s32.totalorder %s23, 1
        %s308 = scalar_select %p307, %s23, 1
        %s309 = smul.addr %s308, 4
        %s310 = smul.addr %s309, 8
        %s311 = scalar_lea.vmem %s6, %s310
        %p312 = pneg %p206
        %p313 = pneg %p203
        %p314 = scmp.lt.s32.totalorder %s23, 1
        %s315 = scalar_select %p314, %s23, 1
        %s316 = smul.addr %s315, 16
        %s317 = smul.addr %s316, 4
        %s318 = scalar_lea.vmem %s7, %s317
        %p319 = scmp.lt.s32.totalorder %s23, 1
        %s320 = scalar_select %p319, %s23, 1
        %s321 = smul.addr %s320, 2
        %s322 = smul.addr %s321, 8
        %s323 = scalar_lea.vmem %s0, %s322
        %p324 = scmp.lt.s32.totalorder %s23, 1
        %s325 = scalar_select %p324, %s23, 1
        %s326 = smul.addr %s325, 8
        %s327 = scalar_lea.vmem %s1, %s326
        %p328 = scmp.lt.s32.totalorder %s23, 1
        %s329 = scalar_select %p328, %s23, 1
        %s330 = smul.addr %s329, 4
        %s331 = smul.addr %s330, 8
        %s332 = scalar_lea.vmem %s6, %s331
        %p333 = scmp.lt.s32.totalorder %s23, 1
        %s334 = scalar_select %p333, %s23, 1
        %s335 = smul.addr %s334, 16
        %s336 = smul.addr %s335, 4
        %s337 = scalar_lea.vmem %s7, %s336
        %s338 = sld [smem:[#allocation2]]
        %v339 = vld [vmem:[%s323 + $0x1] sm:$0xff]
        %s340 = sld [smem:[#allocation4 + $0x5]]
        %v341 = vstv %s340
        %v342 = vmul.f32 %v341, %v339
        %s343 = sld [smem:[#allocation4 + $0x7]]
        %v344 = vstv %s343
        %v345 = vmul.f32 %v344, %v339
        %347 = vrot.lane.b32.xlu0 %v345, 1
        %v348 = vpop.permute.xlu0 %347
        %v350 = vadd.f32 %v342, %v348
        %v351 = vld [vmem:[%s323] sm:$0xff]
        %s352 = sld [smem:[#allocation4 + $0xd]]
        %v353 = vstv %s352
        %v354 = vmul.f32 %v353, %v351
        %v355 = vadd.f32 %v350, %v354
        %s356 = sld [smem:[#allocation4 + $0xf]]
        %v357 = vstv %s356
        %v358 = vmul.f32 %v357, %v351
        %360 = vrot.lane.b32.xlu0 %v358, 1
        %v361 = vpop.permute.xlu0 %360
        %v363 = vadd.f32 %v355, %v361
        %v364 = vstv %s338
        %v365 = vadd.f32 %v363, %v364
        %367 = vrot.lane.b32.xlu0 %v365, 127
        %v368 = vpop.permute.xlu0 %367
        %vm370 = vcmask 64512
        %371 = vst.msk [vmem:[%s332] sm:$0xff] %vm370, %v368
        %v372 = vld [vmem:[%s323 + $0x1] sm:$0xff]
        %s373 = sld [smem:[#allocation4 + $0x4]]
        %v374 = vstv %s373
        %v375 = vmul.f32 %v374, %v372
        %s376 = sld [smem:[#allocation4 + $0x6]]
        %v377 = vstv %s376
        %v378 = vmul.f32 %v377, %v339
        %380 = vrot.lane.b32.xlu0 %v378, 1
        %v381 = vpop.permute.xlu0 %380
        %v383 = vadd.f32 %v375, %v381
        %v384 = vld [vmem:[%s323] sm:$0xff]
        %s385 = sld [smem:[#allocation4 + $0xc]]
        %v386 = vstv %s385
        %v387 = vmul.f32 %v386, %v384
        %v388 = vadd.f32 %v383, %v387
        %s389 = sld [smem:[#allocation4 + $0xe]]
        %v390 = vstv %s389
        %v391 = vmul.f32 %v390, %v351
        %393 = vrot.lane.b32.xlu0 %v391, 1
        %v394 = vpop.permute.xlu0 %393
        %v396 = vadd.f32 %v388, %v394
        %v397 = vadd.f32 %v396, %v364
        %399 = vrot.lane.b32.xlu0 %v397, 126
        %v400 = vpop.permute.xlu0 %399
        %s402 = scalar_lea.vmem %s332, 8
        %403 = vst.msk [vmem:[%s402] sm:$0xff] %vm370, %v400
        %v404 = vld [vmem:[%s323 + $0x2] sm:$0xff]
        %s405 = sld [smem:[#allocation4 + $0x1]]
        %v406 = vstv %s405
        %v407 = vmul.f32 %v406, %v404
        %s408 = sld [smem:[#allocation4 + $0x3]]
        %v409 = vstv %s408
        %v410 = vmul.f32 %v409, %v404
        %412 = vrot.lane.b32.xlu0 %v410, 1
        %v413 = vpop.permute.xlu0 %412
        %v415 = vadd.f32 %v407, %v413
        %s416 = sld [smem:[#allocation4 + $0x9]]
        %v417 = vstv %s416
        %v418 = vmul.f32 %v417, %v339
        %v419 = vadd.f32 %v415, %v418
        %s420 = sld [smem:[#allocation4 + $0xb]]
        %v421 = vstv %s420
        %v422 = vmul.f32 %v421, %v339
        %424 = vrot.lane.b32.xlu0 %v422, 1
        %v425 = vpop.permute.xlu0 %424
        %v427 = vadd.f32 %v419, %v425
        %v428 = vadd.f32 %v427, %v364
        %430 = vrot.lane.b32.xlu0 %v428, 127
        %v431 = vpop.permute.xlu0 %430
        %s433 = scalar_lea.vmem %s332, 16
        %434 = vst.msk [vmem:[%s433] sm:$0xff] %vm370, %v431
        %v435 = vld [vmem:[%s323 + $0x2] sm:$0xff]
        %s436 = sld [smem:[#allocation4]]
        %v437 = vstv %s436
        %v438 = vmul.f32 %v437, %v435
        %s439 = sld [smem:[#allocation4 + $0x2]]
        %v440 = vstv %s439
        %v441 = vmul.f32 %v440, %v404
        %443 = vrot.lane.b32.xlu0 %v441, 1
        %v444 = vpop.permute.xlu0 %443
        %v446 = vadd.f32 %v438, %v444
        %s447 = sld [smem:[#allocation4 + $0x8]]
        %v448 = vstv %s447
        %v449 = vmul.f32 %v448, %v372
        %v450 = vadd.f32 %v446, %v449
        %s451 = sld [smem:[#allocation4 + $0xa]]
        %v452 = vstv %s451
        %v453 = vmul.f32 %v452, %v339
        %455 = vrot.lane.b32.xlu0 %v453, 1
        %v456 = vpop.permute.xlu0 %455
        %v458 = vadd.f32 %v450, %v456
        %v459 = vadd.f32 %v458, %v364
        %461 = vrot.lane.b32.xlu0 %v459, 126
        %v462 = vpop.permute.xlu0 %461
        %s464 = scalar_lea.vmem %s332, 24
        %465 = vst.msk [vmem:[%s464] sm:$0xff] %vm370, %v462
        %s466 = sld [smem:[#allocation3]]
        %v467 = vld [vmem:[%s327 + $0x1] sm:$0xf]
        %s468 = sld [smem:[#allocation6 + $0x12]]
        %v469 = vstv %s468
        %v470 = vmul.f32 %v469, %v467
        %s471 = sld [smem:[#allocation6 + $0x16]]
        %v472 = vstv %s471
        %v473 = vmul.f32 %v472, %v467
        %475 = vrot.lane.b32.xlu0 %v473, 1
        %v476 = vpop.permute.xlu0 %475
        %v478 = vadd.f32 %v470, %v476
        %v479 = vld [vmem:[%s327] sm:$0xf]
        %s480 = sld [smem:[#allocation6 + $0x32]]
        %v481 = vstv %s480
        %v482 = vmul.f32 %v481, %v479
        %v483 = vadd.f32 %v478, %v482
        %s484 = sld [smem:[#allocation6 + $0x36]]
        %v485 = vstv %s484
        %v486 = vmul.f32 %v485, %v479
        %488 = vrot.lane.b32.xlu0 %v486, 1
        %v489 = vpop.permute.xlu0 %488
        %v491 = vadd.f32 %v483, %v489
        %v492 = vstv %s466
        %v493 = vadd.f32 %v491, %v492
        %495 = vrot.lane.b32.xlu0 %v493, 127
        %v496 = vpop.permute.xlu0 %495
        %vm498 = vcmask 27648
        %499 = vst.msk [vmem:[%s337] sm:$0xf] %vm498, %v496
        %s500 = sld [smem:[#allocation6 + $0x13]]
        %v501 = vstv %s500
        %v502 = vmul.f32 %v501, %v467
        %s503 = sld [smem:[#allocation6 + $0x17]]
        %v504 = vstv %s503
        %v505 = vmul.f32 %v504, %v467
        %507 = vrot.lane.b32.xlu0 %v505, 1
        %v508 = vpop.permute.xlu0 %507
        %v510 = vadd.f32 %v502, %v508
        %s511 = sld [smem:[#allocation6 + $0x33]]
        %v512 = vstv %s511
        %v513 = vmul.f32 %v512, %v479
        %v514 = vadd.f32 %v510, %v513
        %s515 = sld [smem:[#allocation6 + $0x37]]
        %v516 = vstv %s515
        %v517 = vmul.f32 %v516, %v479
        %519 = vrot.lane.b32.xlu0 %v517, 1
        %v520 = vpop.permute.xlu0 %519
        %v522 = vadd.f32 %v514, %v520
        %v523 = vadd.f32 %v522, %v492
        %525 = vrot.lane.b32.xlu0 %v523, 127
        %v526 = vpop.permute.xlu0 %525
        %s528 = scalar_lea.vmem %s337, 4
        %529 = vst.msk [vmem:[%s528] sm:$0xf] %vm498, %v526
        %v530 = vld [vmem:[%s327 + $0x1] sm:$0xf]
        %s531 = sld [smem:[#allocation6 + $0x10]]
        %v532 = vstv %s531
        %v533 = vmul.f32 %v532, %v530
        %s534 = sld [smem:[#allocation6 + $0x14]]
        %v535 = vstv %s534
        %v536 = vmul.f32 %v535, %v467
        %538 = vrot.lane.b32.xlu0 %v536, 1
        %v539 = vpop.permute.xlu0 %538
        %v541 = vadd.f32 %v533, %v539
        %v542 = vld [vmem:[%s327] sm:$0xf]
        %s543 = sld [smem:[#allocation6 + $0x30]]
        %v544 = vstv %s543
        %v545 = vmul.f32 %v544, %v542
        %v546 = vadd.f32 %v541, %v545
        %s547 = sld [smem:[#allocation6 + $0x34]]
        %v548 = vstv %s547
        %v549 = vmul.f32 %v548, %v479
        %551 = vrot.lane.b32.xlu0 %v549, 1
        %v552 = vpop.permute.xlu0 %551
        %v554 = vadd.f32 %v546, %v552
        %v555 = vadd.f32 %v554, %v492
        %557 = vrot.lane.b32.xlu0 %v555, 126
        %v558 = vpop.permute.xlu0 %557
        %s560 = scalar_lea.vmem %s337, 8
        %561 = vst.msk [vmem:[%s560] sm:$0xf] %vm498, %v558
        %s562 = sld [smem:[#allocation6 + $0x11]]
        %v563 = vstv %s562
        %v564 = vmul.f32 %v563, %v530
        %s565 = sld [smem:[#allocation6 + $0x15]]
        %v566 = vstv %s565
        %v567 = vmul.f32 %v566, %v467
        %569 = vrot.lane.b32.xlu0 %v567, 1
        %v570 = vpop.permute.xlu0 %569
        %v572 = vadd.f32 %v564, %v570
        %s573 = sld [smem:[#allocation6 + $0x31]]
        %v574 = vstv %s573
        %v575 = vmul.f32 %v574, %v542
        %v576 = vadd.f32 %v572, %v575
        %s577 = sld [smem:[#allocation6 + $0x35]]
        %v578 = vstv %s577
        %v579 = vmul.f32 %v578, %v479
        %581 = vrot.lane.b32.xlu0 %v579, 1
        %v582 = vpop.permute.xlu0 %581
        %v584 = vadd.f32 %v576, %v582
        %v585 = vadd.f32 %v584, %v492
        %587 = vrot.lane.b32.xlu0 %v585, 126
        %v588 = vpop.permute.xlu0 %587
        %s590 = scalar_lea.vmem %s337, 12
        %591 = vst.msk [vmem:[%s590] sm:$0xf] %vm498, %v588
        %s592 = sld [smem:[#allocation6 + $0x1a]]
        %v593 = vstv %s592
        %v594 = vmul.f32 %v593, %v467
        %s595 = sld [smem:[#allocation6 + $0x1e]]
        %v596 = vstv %s595
        %v597 = vmul.f32 %v596, %v467
        %599 = vrot.lane.b32.xlu0 %v597, 1
        %v600 = vpop.permute.xlu0 %599
        %v602 = vadd.f32 %v594, %v600
        %s603 = sld [smem:[#allocation6 + $0x3a]]
        %v604 = vstv %s603
        %v605 = vmul.f32 %v604, %v479
        %v606 = vadd.f32 %v602, %v605
        %s607 = sld [smem:[#allocation6 + $0x3e]]
        %v608 = vstv %s607
        %v609 = vmul.f32 %v608, %v479
        %611 = vrot.lane.b32.xlu0 %v609, 1
        %v612 = vpop.permute.xlu0 %611
        %v614 = vadd.f32 %v606, %v612
        %v615 = vadd.f32 %v614, %v492
        %617 = vrot.lane.b32.xlu0 %v615, 127
        %v618 = vpop.permute.xlu0 %617
        %s620 = scalar_lea.vmem %s337, 16
        %621 = vst.msk [vmem:[%s620] sm:$0xf] %vm498, %v618
        %s622 = sld [smem:[#allocation6 + $0x1b]]
        %v623 = vstv %s622
        %v624 = vmul.f32 %v623, %v467
        %s625 = sld [smem:[#allocation6 + $0x1f]]
        %v626 = vstv %s625
        %v627 = vmul.f32 %v626, %v467
        %629 = vrot.lane.b32.xlu0 %v627, 1
        %v630 = vpop.permute.xlu0 %629
        %v632 = vadd.f32 %v624, %v630
        %s633 = sld [smem:[#allocation6 + $0x3b]]
        %v634 = vstv %s633
        %v635 = vmul.f32 %v634, %v479
        %v636 = vadd.f32 %v632, %v635
        %s637 = sld [smem:[#allocation6 + $0x3f]]
        %v638 = vstv %s637
        %v639 = vmul.f32 %v638, %v479
        %641 = vrot.lane.b32.xlu0 %v639, 1
        %v642 = vpop.permute.xlu0 %641
        %v644 = vadd.f32 %v636, %v642
        %v645 = vadd.f32 %v644, %v492
        %647 = vrot.lane.b32.xlu0 %v645, 127
        %v648 = vpop.permute.xlu0 %647
        %s650 = scalar_lea.vmem %s337, 20
        %651 = vst.msk [vmem:[%s650] sm:$0xf] %vm498, %v648
        %s652 = sld [smem:[#allocation6 + $0x18]]
        %v653 = vstv %s652
        %v654 = vmul.f32 %v653, %v530
        %s655 = sld [smem:[#allocation6 + $0x1c]]
        %v656 = vstv %s655
        %v657 = vmul.f32 %v656, %v467
        %659 = vrot.lane.b32.xlu0 %v657, 1
        %v660 = vpop.permute.xlu0 %659
        %v662 = vadd.f32 %v654, %v660
        %s663 = sld [smem:[#allocation6 + $0x38]]
        %v664 = vstv %s663
        %v665 = vmul.f32 %v664, %v542
        %v666 = vadd.f32 %v662, %v665
        %s667 = sld [smem:[#allocation6 + $0x3c]]
        %v668 = vstv %s667
        %v669 = vmul.f32 %v668, %v479
        %671 = vrot.lane.b32.xlu0 %v669, 1
        %v672 = vpop.permute.xlu0 %671
        %v674 = vadd.f32 %v666, %v672
        %v675 = vadd.f32 %v674, %v492
        %677 = vrot.lane.b32.xlu0 %v675, 126
        %v678 = vpop.permute.xlu0 %677
        %s680 = scalar_lea.vmem %s337, 24
        %681 = vst.msk [vmem:[%s680] sm:$0xf] %vm498, %v678
        %s682 = sld [smem:[#allocation6 + $0x19]]
        %v683 = vstv %s682
        %v684 = vmul.f32 %v683, %v530
        %s685 = sld [smem:[#allocation6 + $0x1d]]
        %v686 = vstv %s685
        %v687 = vmul.f32 %v686, %v467
        %689 = vrot.lane.b32.xlu0 %v687, 1
        %v690 = vpop.permute.xlu0 %689
        %v692 = vadd.f32 %v684, %v690
        %s693 = sld [smem:[#allocation6 + $0x39]]
        %v694 = vstv %s693
        %v695 = vmul.f32 %v694, %v542
        %v696 = vadd.f32 %v692, %v695
        %s697 = sld [smem:[#allocation6 + $0x3d]]
        %v698 = vstv %s697
        %v699 = vmul.f32 %v698, %v479
        %701 = vrot.lane.b32.xlu0 %v699, 1
        %v702 = vpop.permute.xlu0 %701
        %v704 = vadd.f32 %v696, %v702
        %v705 = vadd.f32 %v704, %v492
        %707 = vrot.lane.b32.xlu0 %v705, 126
        %v708 = vpop.permute.xlu0 %707
        %s710 = scalar_lea.vmem %s337, 28
        %711 = vst.msk [vmem:[%s710] sm:$0xf] %vm498, %v708
        %v712 = vld [vmem:[%s327 + $0x2] sm:$0xf]
        %s713 = sld [smem:[#allocation6 + $0x2]]
        %v714 = vstv %s713
        %v715 = vmul.f32 %v714, %v712
        %s716 = sld [smem:[#allocation6 + $0x6]]
        %v717 = vstv %s716
        %v718 = vmul.f32 %v717, %v712
        %720 = vrot.lane.b32.xlu0 %v718, 1
        %v721 = vpop.permute.xlu0 %720
        %v723 = vadd.f32 %v715, %v721
        %s724 = sld [smem:[#allocation6 + $0x22]]
        %v725 = vstv %s724
        %v726 = vmul.f32 %v725, %v467
        %v727 = vadd.f32 %v723, %v726
        %s728 = sld [smem:[#allocation6 + $0x26]]
        %v729 = vstv %s728
        %v730 = vmul.f32 %v729, %v467
        %732 = vrot.lane.b32.xlu0 %v730, 1
        %v733 = vpop.permute.xlu0 %732
        %v735 = vadd.f32 %v727, %v733
        %v736 = vadd.f32 %v735, %v492
        %738 = vrot.lane.b32.xlu0 %v736, 127
        %v739 = vpop.permute.xlu0 %738
        %s741 = scalar_lea.vmem %s337, 32
        %742 = vst.msk [vmem:[%s741] sm:$0xf] %vm498, %v739
        %s743 = sld [smem:[#allocation6 + $0x3]]
        %v744 = vstv %s743
        %v745 = vmul.f32 %v744, %v712
        %s746 = sld [smem:[#allocation6 + $0x7]]
        %v747 = vstv %s746
        %v748 = vmul.f32 %v747, %v712
        %750 = vrot.lane.b32.xlu0 %v748, 1
        %v751 = vpop.permute.xlu0 %750
        %v753 = vadd.f32 %v745, %v751
        %s754 = sld [smem:[#allocation6 + $0x23]]
        %v755 = vstv %s754
        %v756 = vmul.f32 %v755, %v467
        %v757 = vadd.f32 %v753, %v756
        %s758 = sld [smem:[#allocation6 + $0x27]]
        %v759 = vstv %s758
        %v760 = vmul.f32 %v759, %v467
        %762 = vrot.lane.b32.xlu0 %v760, 1
        %v763 = vpop.permute.xlu0 %762
        %v765 = vadd.f32 %v757, %v763
        %v766 = vadd.f32 %v765, %v492
        %768 = vrot.lane.b32.xlu0 %v766, 127
        %v769 = vpop.permute.xlu0 %768
        %s771 = scalar_lea.vmem %s337, 36
        %772 = vst.msk [vmem:[%s771] sm:$0xf] %vm498, %v769
        %v773 = vld [vmem:[%s327 + $0x2] sm:$0xf]
        %s774 = sld [smem:[#allocation6]]
        %v775 = vstv %s774
        %v776 = vmul.f32 %v775, %v773
        %s777 = sld [smem:[#allocation6 + $0x4]]
        %v778 = vstv %s777
        %v779 = vmul.f32 %v778, %v712
        %781 = vrot.lane.b32.xlu0 %v779, 1
        %v782 = vpop.permute.xlu0 %781
        %v784 = vadd.f32 %v776, %v782
        %s785 = sld [smem:[#allocation6 + $0x20]]
        %v786 = vstv %s785
        %v787 = vmul.f32 %v786, %v530
        %v788 = vadd.f32 %v784, %v787
        %s789 = sld [smem:[#allocation6 + $0x24]]
        %v790 = vstv %s789
        %v791 = vmul.f32 %v790, %v467
        %793 = vrot.lane.b32.xlu0 %v791, 1
        %v794 = vpop.permute.xlu0 %793
        %v796 = vadd.f32 %v788, %v794
        %v797 = vadd.f32 %v796, %v492
        %799 = vrot.lane.b32.xlu0 %v797, 126
        %v800 = vpop.permute.xlu0 %799
        %s802 = scalar_lea.vmem %s337, 40
        %803 = vst.msk [vmem:[%s802] sm:$0xf] %vm498, %v800
        %s804 = sld [smem:[#allocation6 + $0x1]]
        %v805 = vstv %s804
        %v806 = vmul.f32 %v805, %v773
        %s807 = sld [smem:[#allocation6 + $0x5]]
        %v808 = vstv %s807
        %v809 = vmul.f32 %v808, %v712
        %811 = vrot.lane.b32.xlu0 %v809, 1
        %v812 = vpop.permute.xlu0 %811
        %v814 = vadd.f32 %v806, %v812
        %s815 = sld [smem:[#allocation6 + $0x21]]
        %v816 = vstv %s815
        %v817 = vmul.f32 %v816, %v530
        %v818 = vadd.f32 %v814, %v817
        %s819 = sld [smem:[#allocation6 + $0x25]]
        %v820 = vstv %s819
        %v821 = vmul.f32 %v820, %v467
        %823 = vrot.lane.b32.xlu0 %v821, 1
        %v824 = vpop.permute.xlu0 %823
        %v826 = vadd.f32 %v818, %v824
        %v827 = vadd.f32 %v826, %v492
        %829 = vrot.lane.b32.xlu0 %v827, 126
        %v830 = vpop.permute.xlu0 %829
        %s832 = scalar_lea.vmem %s337, 44
        %833 = vst.msk [vmem:[%s832] sm:$0xf] %vm498, %v830
        %s834 = sld [smem:[#allocation6 + $0xa]]
        %v835 = vstv %s834
        %v836 = vmul.f32 %v835, %v712
        %s837 = sld [smem:[#allocation6 + $0xe]]
        %v838 = vstv %s837
        %v839 = vmul.f32 %v838, %v712
        %841 = vrot.lane.b32.xlu0 %v839, 1
        %v842 = vpop.permute.xlu0 %841
        %v844 = vadd.f32 %v836, %v842
        %s845 = sld [smem:[#allocation6 + $0x2a]]
        %v846 = vstv %s845
        %v847 = vmul.f32 %v846, %v467
        %v848 = vadd.f32 %v844, %v847
        %s849 = sld [smem:[#allocation6 + $0x2e]]
        %v850 = vstv %s849
        %v851 = vmul.f32 %v850, %v467
        %853 = vrot.lane.b32.xlu0 %v851, 1
        %v854 = vpop.permute.xlu0 %853
        %v856 = vadd.f32 %v848, %v854
        %v857 = vadd.f32 %v856, %v492
        %859 = vrot.lane.b32.xlu0 %v857, 127
        %v860 = vpop.permute.xlu0 %859
        %s862 = scalar_lea.vmem %s337, 48
        %863 = vst.msk [vmem:[%s862] sm:$0xf] %vm498, %v860
        %s864 = sld [smem:[#allocation6 + $0xb]]
        %v865 = vstv %s864
        %v866 = vmul.f32 %v865, %v712
        %s867 = sld [smem:[#allocation6 + $0xf]]
        %v868 = vstv %s867
        %v869 = vmul.f32 %v868, %v712
        %871 = vrot.lane.b32.xlu0 %v869, 1
        %v872 = vpop.permute.xlu0 %871
        %v874 = vadd.f32 %v866, %v872
        %s875 = sld [smem:[#allocation6 + $0x2b]]
        %v876 = vstv %s875
        %v877 = vmul.f32 %v876, %v467
        %v878 = vadd.f32 %v874, %v877
        %s879 = sld [smem:[#allocation6 + $0x2f]]
        %v880 = vstv %s879
        %v881 = vmul.f32 %v880, %v467
        %883 = vrot.lane.b32.xlu0 %v881, 1
        %v884 = vpop.permute.xlu0 %883
        %v886 = vadd.f32 %v878, %v884
        %v887 = vadd.f32 %v886, %v492
        %889 = vrot.lane.b32.xlu0 %v887, 127
        %v890 = vpop.permute.xlu0 %889
        %s892 = scalar_lea.vmem %s337, 52
        %893 = vst.msk [vmem:[%s892] sm:$0xf] %vm498, %v890
        %s894 = sld [smem:[#allocation6 + $0x8]]
        %v895 = vstv %s894
        %v896 = vmul.f32 %v895, %v773
        %s897 = sld [smem:[#allocation6 + $0xc]]
        %v898 = vstv %s897
        %v899 = vmul.f32 %v898, %v712
        %901 = vrot.lane.b32.xlu0 %v899, 1
        %v902 = vpop.permute.xlu0 %901
        %v904 = vadd.f32 %v896, %v902
        %s905 = sld [smem:[#allocation6 + $0x28]]
        %v906 = vstv %s905
        %v907 = vmul.f32 %v906, %v530
        %v908 = vadd.f32 %v904, %v907
        %s909 = sld [smem:[#allocation6 + $0x2c]]
        %v910 = vstv %s909
        %v911 = vmul.f32 %v910, %v467
        %913 = vrot.lane.b32.xlu0 %v911, 1
        %v914 = vpop.permute.xlu0 %913
        %v916 = vadd.f32 %v908, %v914
        %v917 = vadd.f32 %v916, %v492
        %919 = vrot.lane.b32.xlu0 %v917, 126
        %v920 = vpop.permute.xlu0 %919
        %s922 = scalar_lea.vmem %s337, 56
        %923 = vst.msk [vmem:[%s922] sm:$0xf] %vm498, %v920
        %s924 = sld [smem:[#allocation6 + $0x9]]
        %v925 = vstv %s924
        %v926 = vmul.f32 %v925, %v773
        %s927 = sld [smem:[#allocation6 + $0xd]]
        %v928 = vstv %s927
        %v929 = vmul.f32 %v928, %v712
        %931 = vrot.lane.b32.xlu0 %v929, 1
        %v932 = vpop.permute.xlu0 %931
        %v934 = vadd.f32 %v926, %v932
        %s935 = sld [smem:[#allocation6 + $0x29]]
        %v936 = vstv %s935
        %v937 = vmul.f32 %v936, %v530
        %v938 = vadd.f32 %v934, %v937
        %s939 = sld [smem:[#allocation6 + $0x2d]]
        %v940 = vstv %s939
        %v941 = vmul.f32 %v940, %v467
        %943 = vrot.lane.b32.xlu0 %v941, 1
        %v944 = vpop.permute.xlu0 %943
        %v946 = vadd.f32 %v938, %v944
        %v947 = vadd.f32 %v946, %v492
        %949 = vrot.lane.b32.xlu0 %v947, 126
        %v950 = vpop.permute.xlu0 %949
        %s952 = scalar_lea.vmem %s337, 60
        %953 = vst.msk [vmem:[%s952] sm:$0xf] %vm498, %v950
        %p954 = scmp.lt.s32.totalorder %s23, 1
        %s955 = scalar_select %p954, %s23, 1
        %s956 = smul.addr %s955, 4
        %s957 = smul.addr %s956, 8
        %s958 = scalar_lea.vmem %s6, %s957
        %p959 = scmp.lt.s32.totalorder %s23, 1
        %s960 = scalar_select %p959, %s23, 1
        %s961 = smul.addr %s960, 16
        %s962 = smul.addr %s961, 4
        %s963 = scalar_lea.vmem %s7, %s962
        // Predicated region
        $region53: #{_lambda_.2} parent=43 // pred_check
          %p964 = pneg %p177
        $region54: #{_lambda_.2} parent=43 // pred_check_branch
          %966 = sbr.rel (%p964) target = $region56
        $region55: #{_lambda_.2} parent=43 // pred_region
          _
        $region56: #{_lambda_.2} parent=43 // pred_fallthru
          _
        // Predicated region
        $region57: #{_lambda_.2} parent=43 // pred_check
          %p967 = pneg %p203
        $region58: #{_lambda_.2} parent=43 // pred_check_branch
          %969 = sbr.rel (%p967) target = $region60
        $region59: #{_lambda_.2} parent=43 // pred_region
          _
        $region60: #{_lambda_.2} parent=43 // pred_fallthru
          _
      $region44: #{_lambda_.2} parent=5 // pred_fallthru
        _
      %p970 = scmp.le.s32.totalorder 2, %s18
      // Predicated region
      $region61: #{_lambda_.2} parent=5 // pred_check
        %p971 = pneg %p970
      $region62: #{_lambda_.2} parent=5 // pred_check_branch
        %973 = sbr.rel (%p971) target = $region64
      $region63: #{_lambda_.2} parent=5 // pred_region
        %s974 = ssub.s32 %s18, 2
        // Predicated region
        $region65: #{_lambda_.2} parent=63 // pred_check
          %p975 = pneg %p183
        $region66: #{_lambda_.2} parent=63 // pred_check_branch
          %977 = sbr.rel (%p975) target = $region68
        $region67: #{_lambda_.2} parent=63 // pred_region
          %p978 = scmp.lt.s32.totalorder %s24, 1
          %s979 = scalar_select %p978, %s24, 1
          %s980 = smul.addr %s979, 4
          %s981 = smul.addr %s980, 8
          %s982 = scalar_lea.vmem %s6, %s981
        $region68: #{_lambda_.2} parent=63 // pred_fallthru
          _
        // Predicated region
        $region69: #{_lambda_.2} parent=63 // pred_check
          %p983 = pneg %p209
        $region70: #{_lambda_.2} parent=63 // pred_check_branch
          %985 = sbr.rel (%p983) target = $region72
        $region71: #{_lambda_.2} parent=63 // pred_region
          %p986 = scmp.lt.s32.totalorder %s24, 1
          %s987 = scalar_select %p986, %s24, 1
          %s988 = smul.addr %s987, 16
          %s989 = smul.addr %s988, 4
          %s990 = scalar_lea.vmem %s7, %s989
        $region72: #{_lambda_.2} parent=63 // pred_fallthru
          _
      $region64: #{_lambda_.2} parent=5 // pred_fallthru
        _
    $region6: #{_lambda_.2} parent=1 // loop_footer
      %s22 = sadd.s32 1, %s18
    $region7: #{_lambda_.2} parent=1 // loop_footer_branch
      %17 = sbr.rel target = $region3
    $region8: #{_lambda_.2} parent=1 // loop_exit
      _
    %991 = vsyncpa [#allocation5], 1
    %s992 = scalar_lea.sflag [#allocation5], 1
    %993 = vsyncpa %s992, 1
    %994 = vsyncpa [#allocation7], 1

</llo_original>
